<compile_context>
chip_gen: v5e
topology: v5e:2x2
jax: 0.10.0
libtpu: 0.0.40
codegen_flags: <defaults>
</compile_context>

<pallas_src>
import jax
import jax.numpy as jnp
from jax.experimental import pallas as pl
from jax.experimental.pallas import tpu as pltpu

# ---- small synthetic "transformer" config (AutoModel weights are synthesized) ----
VOCAB = 128
HIDDEN = 32
NUM_HEADS = 2
HEAD_DIM = HIDDEN // NUM_HEADS
INTERMEDIATE = 64
NUM_LAYERS = 2
MAX_SEQ = 8
NUM_LABELS = 3
LOGITS_PAD = 128          # lane-dense width for the logits output
LN_EPS = 1e-12


def _layernorm(x, gamma, beta):
    mu = jnp.mean(x, axis=-1, keepdims=True)
    var = jnp.mean((x - mu) ** 2, axis=-1, keepdims=True)
    return (x - mu) * jax.lax.rsqrt(var + LN_EPS) * gamma + beta


# ----------------------------- fused Pallas kernel ------------------------------

def fused_forward_kernel(
        ids_ref, mask_ref, labels_ref,
        word_emb_ref, pos_emb_ref, emb_ln_g_ref, emb_ln_b_ref,
        wqkv_ref, bqkv_ref, wo_ref, bo_ref, ln1_g_ref, ln1_b_ref,
        w1_ref, b1_ref, w2_ref, b2_ref, ln2_g_ref, ln2_b_ref,
        pool_w_ref, pool_b_ref, cls_w_ref, cls_b_ref,
        logits_ref, loss_ref):
    B, S = mask_ref.shape
    H = HIDDEN

    # ---- embeddings as a one-hot MXU matmul (VOCAB = 128 = one lane tile) ----
    ids = ids_ref[...]                                           # (B*S, 1) int32
    onehot_ids = (jax.lax.broadcasted_iota(jnp.int32, (B * S, VOCAB), 1)
                  == ids).astype(jnp.float32)
    x = jnp.dot(onehot_ids, word_emb_ref[...],
                preferred_element_type=jnp.float32)              # (B*S, H)
    x = x.reshape(B, S, H) + pos_emb_ref[...][None, :, :]
    x = _layernorm(x, emb_ln_g_ref[...], emb_ln_b_ref[...])
    x2 = x.reshape(B * S, H)

    # ---- additive attention-mask bias, built once and reused across layers ----
    mask = mask_ref[...]                                         # (B, S), 1=keep
    bias = jnp.broadcast_to(((mask - 1.0) * jnp.float32(1e9))[:, None, :],
                            (B, S, S))                           # (B, q, k)
    scale = jnp.float32(1.0 / (HEAD_DIM ** 0.5))

    # ---- encoder layers (unrolled; weights are layer-stacked, static index) ----
    for l in range(NUM_LAYERS):
        # fused QKV projection: one [B*S, H] x [H, 3H] matmul
        qkv = (jnp.dot(x2, wqkv_ref[l], preferred_element_type=jnp.float32)
               + bqkv_ref[l])                                    # (B*S, 3H)
        q = qkv[:, 0 * H:1 * H].reshape(B, S, H)
        k = qkv[:, 1 * H:2 * H].reshape(B, S, H)
        v = qkv[:, 2 * H:3 * H].reshape(B, S, H)

        # per-head attention; output projection split per head (no concat)
        wo_l = wo_ref[l]                                         # (H, H)
        attn = bo_ref[l]                                         # (1, H), broadcasts
        for h in range(NUM_HEADS):
            sl = slice(h * HEAD_DIM, (h + 1) * HEAD_DIM)
            s = jnp.einsum('bqd,bkd->bqk', q[:, :, sl], k[:, :, sl],
                           preferred_element_type=jnp.float32) * scale + bias
            s = s - jnp.max(s, axis=-1, keepdims=True)
            p = jnp.exp(s)
            p = p * pl.reciprocal(jnp.sum(p, axis=-1, keepdims=True), approx=True)
            ctx_h = jnp.einsum('bqk,bkd->bqd', p, v[:, :, sl],
                               preferred_element_type=jnp.float32)   # (B, S, D)
            attn = attn + jnp.dot(ctx_h.reshape(B * S, HEAD_DIM), wo_l[sl, :],
                                  preferred_element_type=jnp.float32)

        h1 = _layernorm(x2 + attn, ln1_g_ref[l], ln1_b_ref[l])   # (B*S, H)

        ff = jnp.dot(h1, w1_ref[l], preferred_element_type=jnp.float32) + b1_ref[l]
        # TODO(synk): HF BERT uses the exact erf GELU; tanh approximation used here.
        ff = jax.nn.gelu(ff, approximate=True)
        ff = jnp.dot(ff, w2_ref[l], preferred_element_type=jnp.float32) + b2_ref[l]

        x2 = _layernorm(h1 + ff, ln2_g_ref[l], ln2_b_ref[l])

    # ---- pooler ([CLS] token) + dropout (eval identity) + classifier ----
    cls = x2.reshape(B, S, H)[:, 0, :]                           # (B, H)
    pooled = jnp.tanh(jnp.dot(cls, pool_w_ref[...],
                              preferred_element_type=jnp.float32) + pool_b_ref[...])
    # TODO(synk): nn.Dropout(0.3) is the identity in eval mode; a training-mode
    # dropout mask would be drawn with pltpu.prng_seed / pltpu.prng_random_bits.
    # cls weights are lane-padded to 128 (zeros in W, -1e9 in b for pad columns),
    # so the store below is a full, unmasked lane-dense store.
    logits = (jnp.dot(pooled, cls_w_ref[...],
                      preferred_element_type=jnp.float32) + cls_b_ref[...])
    logits_ref[...] = logits                                     # (B, 128)

    # ---- CrossEntropyLoss (mean over batch) on padded logits ----
    # pad columns hold -1e9 => exp underflows to 0, they never win the max,
    # and their one-hot weight is 0, so the loss equals CE over the real 3 logits.
    onehot_lab = (jax.lax.broadcasted_iota(jnp.int32, (B, LOGITS_PAD), 1)
                  == labels_ref[...]).astype(jnp.float32)        # (B, 128)
    m = jnp.max(logits, axis=-1, keepdims=True)
    lse = m + jnp.log(jnp.sum(jnp.exp(logits - m), axis=-1, keepdims=True))
    nll = jnp.sum(onehot_lab * (lse - logits), axis=-1, keepdims=True)   # (B, 1)
    loss_ref[0, 0] = jnp.sum(nll) * jnp.float32(1.0 / B)


# ------------------------------ Pallas wrapper ----------------------------------

def run_forward(params, input_ids, attention_mask, labels):
    B, S = input_ids.shape
    args = (
        input_ids.astype(jnp.int32).reshape(B * S, 1),
        attention_mask.astype(jnp.float32),
        labels.astype(jnp.int32).reshape(B, 1),
        params['word_emb'], params['pos_emb'],
        params['emb_ln_g'], params['emb_ln_b'],
        params['wqkv'], params['bqkv'], params['wo'], params['bo'],
        params['ln1_g'], params['ln1_b'],
        params['w1'], params['b1'], params['w2'], params['b2'],
        params['ln2_g'], params['ln2_b'],
        params['pool_w'], params['pool_b'],
        params['cls_w_pad'], params['cls_b_pad'],
    )
    logits_pad, loss = pl.pallas_call(
        fused_forward_kernel,
        out_shape=(jax.ShapeDtypeStruct((B, LOGITS_PAD), jnp.float32),
                   jax.ShapeDtypeStruct((1, 1), jnp.float32)),
        in_specs=[pl.BlockSpec(memory_space=pltpu.MemorySpace.VMEM)] * len(args),
        out_specs=(pl.BlockSpec(memory_space=pltpu.MemorySpace.VMEM),
                   pl.BlockSpec(memory_space=pltpu.MemorySpace.SMEM)),
    )(*args)
    return logits_pad[:, :NUM_LABELS], loss[0, 0]


# ------------------------------ parameter setup ---------------------------------

def init_params(key):
    keys = iter(jax.random.split(key, 16))

    def dense(fan_in, fan_out):
        return (jax.random.normal(next(keys), (fan_in, fan_out), jnp.float32)
                * jnp.float32(0.02))

    def stacked(fan_in, fan_out):
        return (jax.random.normal(next(keys), (NUM_LAYERS, fan_in, fan_out),
                                  jnp.float32) * jnp.float32(0.02))

    cls_w = dense(HIDDEN, NUM_LABELS)
    cls_b = jnp.zeros((1, NUM_LABELS), jnp.float32)
    # lane-pad classifier weights: zeros in W, -1e9 in b so softmax ignores pads
    cls_w_pad = jnp.concatenate(
        [cls_w, jnp.zeros((HIDDEN, LOGITS_PAD - NUM_LABELS), jnp.float32)], axis=1)
    cls_b_pad = jnp.concatenate(
        [cls_b, jnp.full((1, LOGITS_PAD - NUM_LABELS), -1e9, jnp.float32)], axis=1)

    params = {
        'word_emb': dense(VOCAB, HIDDEN),
        'pos_emb': dense(MAX_SEQ, HIDDEN),
        'emb_ln_g': jnp.ones((1, HIDDEN), jnp.float32),
        'emb_ln_b': jnp.zeros((1, HIDDEN), jnp.float32),
        # layer-stacked encoder weights (leading dim = layer)
        'wqkv': stacked(HIDDEN, 3 * HIDDEN),
        'bqkv': jnp.zeros((NUM_LAYERS, 1, 3 * HIDDEN), jnp.float32),
        'wo': stacked(HIDDEN, HIDDEN),
        'bo': jnp.zeros((NUM_LAYERS, 1, HIDDEN), jnp.float32),
        'ln1_g': jnp.ones((NUM_LAYERS, 1, HIDDEN), jnp.float32),
        'ln1_b': jnp.zeros((NUM_LAYERS, 1, HIDDEN), jnp.float32),
        'w1': stacked(HIDDEN, INTERMEDIATE),
        'b1': jnp.zeros((NUM_LAYERS, 1, INTERMEDIATE), jnp.float32),
        'w2': stacked(INTERMEDIATE, HIDDEN),
        'b2': jnp.zeros((NUM_LAYERS, 1, HIDDEN), jnp.float32),
        'ln2_g': jnp.ones((NUM_LAYERS, 1, HIDDEN), jnp.float32),
        'ln2_b': jnp.zeros((NUM_LAYERS, 1, HIDDEN), jnp.float32),
        # pooler + classifier
        'pool_w': dense(HIDDEN, HIDDEN),
        'pool_b': jnp.zeros((1, HIDDEN), jnp.float32),
        'cls_w_pad': cls_w_pad,
        'cls_b_pad': cls_b_pad,
    }
    return params


@jax.jit
def forward(params, input_ids, attention_mask, labels):
    logits, loss = run_forward(params, input_ids, attention_mask, labels)
    return {'loss': loss, 'logits': logits}


if __name__ == "__main__":
    root = jax.random.PRNGKey(0)
    params = init_params(root)

    B, S = 2, MAX_SEQ
    kid, klab = jax.random.split(jax.random.PRNGKey(0), 2)
    input_ids = jax.random.randint(kid, (B, S), 0, VOCAB, dtype=jnp.int32)
    attention_mask = jnp.ones((B, S), jnp.int32).at[1, 6:].set(0)   # pad tail of row 1
    labels = jax.random.randint(klab, (B,), 0, NUM_LABELS, dtype=jnp.int32)

    out = forward(params, input_ids, attention_mask, labels)
    jax.block_until_ready(out)

    logits, loss = out['logits'], out['loss']
    assert logits.shape == (B, NUM_LABELS)
    assert bool(jnp.all(jnp.isfinite(logits))) and bool(jnp.isfinite(loss))
    print("KERNEL_OK")
</pallas_src>

<mosaic_0001>
module attributes {stable_mosaic.version = 11 : i64} {
  func.func @fused_forward_kernel(%arg0: memref<16x1xi32, #tpu.memory_space<vmem>>, %arg1: memref<2x8xf32, #tpu.memory_space<vmem>>, %arg2: memref<2x1xi32, #tpu.memory_space<vmem>>, %arg3: memref<128x32xf32, #tpu.memory_space<vmem>>, %arg4: memref<8x32xf32, #tpu.memory_space<vmem>>, %arg5: memref<1x32xf32, #tpu.memory_space<vmem>>, %arg6: memref<1x32xf32, #tpu.memory_space<vmem>>, %arg7: memref<2x32x96xf32, #tpu.memory_space<vmem>>, %arg8: memref<2x1x96xf32, #tpu.memory_space<vmem>>, %arg9: memref<2x32x32xf32, #tpu.memory_space<vmem>>, %arg10: memref<2x1x32xf32, #tpu.memory_space<vmem>>, %arg11: memref<2x1x32xf32, #tpu.memory_space<vmem>>, %arg12: memref<2x1x32xf32, #tpu.memory_space<vmem>>, %arg13: memref<2x32x64xf32, #tpu.memory_space<vmem>>, %arg14: memref<2x1x64xf32, #tpu.memory_space<vmem>>, %arg15: memref<2x64x32xf32, #tpu.memory_space<vmem>>, %arg16: memref<2x1x32xf32, #tpu.memory_space<vmem>>, %arg17: memref<2x1x32xf32, #tpu.memory_space<vmem>>, %arg18: memref<2x1x32xf32, #tpu.memory_space<vmem>>, %arg19: memref<32x32xf32, #tpu.memory_space<vmem>>, %arg20: memref<1x32xf32, #tpu.memory_space<vmem>>, %arg21: memref<32x128xf32, #tpu.memory_space<vmem>>, %arg22: memref<1x128xf32, #tpu.memory_space<vmem>>, %arg23: memref<2x128xf32, #tpu.memory_space<vmem>>, %arg24: memref<1x1xf32, #tpu.memory_space<smem>>) attributes {dimension_semantics = [], scalar_prefetch = 0 : i64, scratch_operands = 0 : i64, tpu.core_type = #tpu.core_type<tc>} {
    %c0 = arith.constant 0 : index
    %c0_0 = arith.constant 0 : index
    %0 = vector.load %arg0[%c0, %c0_0] : memref<16x1xi32, #tpu.memory_space<vmem>>, vector<16x1xi32>
    %1 = tpu.iota {dimensions = array<i32: 1>} : vector<16x128xi32>
    %2 = vector.broadcast %0 : vector<16x1xi32> to vector<16x128xi32>
    %3 = arith.cmpi eq, %1, %2 : vector<16x128xi32>
    %4 = arith.extui %3 : vector<16x128xi1> to vector<16x128xi32>
    %5 = arith.sitofp %4 : vector<16x128xi32> to vector<16x128xf32>
    %c0_1 = arith.constant 0 : index
    %c0_2 = arith.constant 0 : index
    %6 = vector.load %arg3[%c0_1, %c0_2] : memref<128x32xf32, #tpu.memory_space<vmem>>, vector<128x32xf32>
    %cst = arith.constant dense<0.000000e+00> : vector<16x32xf32>
    %7 = tpu.matmul %5, %6, %cst {dimension_numbers = #tpu.dot_dimension_numbers<[1], [0], [0], [1], [0, 0, 1, 1], [], []>} : vector<16x128xf32>, vector<128x32xf32>, vector<16x32xf32> -> vector<16x32xf32>
    %8 = vector.shape_cast %7 : vector<16x32xf32> to vector<2x8x32xf32>
    %c0_3 = arith.constant 0 : index
    %c0_4 = arith.constant 0 : index
    %9 = vector.load %arg4[%c0_3, %c0_4] : memref<8x32xf32, #tpu.memory_space<vmem>>, vector<8x32xf32>
    %10 = vector.shape_cast %9 : vector<8x32xf32> to vector<1x8x32xf32>
    %11 = vector.broadcast %10 : vector<1x8x32xf32> to vector<2x8x32xf32>
    %12 = arith.addf %8, %11 : vector<2x8x32xf32>
    %c0_5 = arith.constant 0 : index
    %c0_6 = arith.constant 0 : index
    %13 = vector.load %arg5[%c0_5, %c0_6] : memref<1x32xf32, #tpu.memory_space<vmem>>, vector<1x32xf32>
    %c0_7 = arith.constant 0 : index
    %c0_8 = arith.constant 0 : index
    %14 = vector.load %arg6[%c0_7, %c0_8] : memref<1x32xf32, #tpu.memory_space<vmem>>, vector<1x32xf32>
    %cst_9 = arith.constant dense<0.000000e+00> : vector<2x8xf32>
    %15 = vector.multi_reduction <add>, %12, %cst_9 [2] : vector<2x8x32xf32> to vector<2x8xf32>
    %16 = vector.shape_cast %15 : vector<2x8xf32> to vector<2x8x1xf32>
    %cst_10 = arith.constant 3.200000e+01 : f32
    %17 = vector.broadcast %cst_10 : f32 to vector<2x8x1xf32>
    %18 = arith.divf %16, %17 : vector<2x8x1xf32>
    %19 = vector.broadcast %18 : vector<2x8x1xf32> to vector<2x8x32xf32>
    %20 = arith.subf %12, %19 : vector<2x8x32xf32>
    %21 = arith.mulf %20, %20 : vector<2x8x32xf32>
    %cst_11 = arith.constant dense<0.000000e+00> : vector<2x8xf32>
    %22 = vector.multi_reduction <add>, %21, %cst_11 [2] : vector<2x8x32xf32> to vector<2x8xf32>
    %23 = vector.shape_cast %22 : vector<2x8xf32> to vector<2x8x1xf32>
    %cst_12 = arith.constant 3.200000e+01 : f32
    %24 = vector.broadcast %cst_12 : f32 to vector<2x8x1xf32>
    %25 = arith.divf %23, %24 : vector<2x8x1xf32>
    %26 = vector.broadcast %18 : vector<2x8x1xf32> to vector<2x8x32xf32>
    %27 = arith.subf %12, %26 : vector<2x8x32xf32>
    %cst_13 = arith.constant 9.99999996E-13 : f32
    %28 = vector.broadcast %cst_13 : f32 to vector<2x8x1xf32>
    %29 = arith.addf %25, %28 : vector<2x8x1xf32>
    %30 = math.rsqrt %29 : vector<2x8x1xf32>
    %31 = vector.broadcast %30 : vector<2x8x1xf32> to vector<2x8x32xf32>
    %32 = arith.mulf %27, %31 : vector<2x8x32xf32>
    %33 = vector.shape_cast %13 : vector<1x32xf32> to vector<1x1x32xf32>
    %34 = vector.broadcast %33 : vector<1x1x32xf32> to vector<2x8x32xf32>
    %35 = arith.mulf %32, %34 : vector<2x8x32xf32>
    %36 = vector.shape_cast %14 : vector<1x32xf32> to vector<1x1x32xf32>
    %37 = vector.broadcast %36 : vector<1x1x32xf32> to vector<2x8x32xf32>
    %38 = arith.addf %35, %37 : vector<2x8x32xf32>
    %39 = vector.shape_cast %38 : vector<2x8x32xf32> to vector<16x32xf32>
    %c0_14 = arith.constant 0 : index
    %c0_15 = arith.constant 0 : index
    %40 = vector.load %arg1[%c0_14, %c0_15] : memref<2x8xf32, #tpu.memory_space<vmem>>, vector<2x8xf32>
    %cst_16 = arith.constant 1.000000e+00 : f32
    %41 = vector.broadcast %cst_16 : f32 to vector<2x8xf32>
    %42 = arith.subf %40, %41 : vector<2x8xf32>
    %cst_17 = arith.constant 1.000000e+09 : f32
    %43 = vector.broadcast %cst_17 : f32 to vector<2x8xf32>
    %44 = arith.mulf %42, %43 : vector<2x8xf32>
    %45 = vector.shape_cast %44 : vector<2x8xf32> to vector<2x1x8xf32>
    %46 = vector.shape_cast %45 : vector<2x1x8xf32> to vector<2x1x8xf32>
    %47 = vector.broadcast %46 : vector<2x1x8xf32> to vector<2x8x8xf32>
    %c0_18 = arith.constant 0 : index
    %c0_19 = arith.constant 0 : index
    %c0_20 = arith.constant 0 : index
    %48 = vector.load %arg7[%c0_18, %c0_19, %c0_20] : memref<2x32x96xf32, #tpu.memory_space<vmem>>, vector<1x32x96xf32>
    %49 = vector.shape_cast %48 : vector<1x32x96xf32> to vector<32x96xf32>
    %cst_21 = arith.constant dense<0.000000e+00> : vector<16x96xf32>
    %50 = tpu.matmul %39, %49, %cst_21 {dimension_numbers = #tpu.dot_dimension_numbers<[1], [0], [0], [1], [0, 0, 1, 1], [], []>} : vector<16x32xf32>, vector<32x96xf32>, vector<16x96xf32> -> vector<16x96xf32>
    %c0_22 = arith.constant 0 : index
    %c0_23 = arith.constant 0 : index
    %c0_24 = arith.constant 0 : index
    %51 = vector.load %arg8[%c0_22, %c0_23, %c0_24] : memref<2x1x96xf32, #tpu.memory_space<vmem>>, vector<1x1x96xf32>
    %52 = vector.shape_cast %51 : vector<1x1x96xf32> to vector<1x96xf32>
    %53 = vector.broadcast %52 : vector<1x96xf32> to vector<16x96xf32>
    %54 = arith.addf %50, %53 : vector<16x96xf32>
    %55 = vector.extract_strided_slice %54 {offsets = [0, 0], sizes = [16, 32], strides = [1, 1]} : vector<16x96xf32> to vector<16x32xf32>
    %56 = vector.shape_cast %55 : vector<16x32xf32> to vector<2x8x32xf32>
    %57 = vector.extract_strided_slice %54 {offsets = [0, 32], sizes = [16, 32], strides = [1, 1]} : vector<16x96xf32> to vector<16x32xf32>
    %58 = vector.shape_cast %57 : vector<16x32xf32> to vector<2x8x32xf32>
    %59 = vector.extract_strided_slice %54 {offsets = [0, 64], sizes = [16, 32], strides = [1, 1]} : vector<16x96xf32> to vector<16x32xf32>
    %60 = vector.shape_cast %59 : vector<16x32xf32> to vector<2x8x32xf32>
    %c0_25 = arith.constant 0 : index
    %c0_26 = arith.constant 0 : index
    %c0_27 = arith.constant 0 : index
    %61 = vector.load %arg9[%c0_25, %c0_26, %c0_27] : memref<2x32x32xf32, #tpu.memory_space<vmem>>, vector<1x32x32xf32>
    %62 = vector.shape_cast %61 : vector<1x32x32xf32> to vector<32x32xf32>
    %c0_28 = arith.constant 0 : index
    %c0_29 = arith.constant 0 : index
    %c0_30 = arith.constant 0 : index
    %63 = vector.load %arg10[%c0_28, %c0_29, %c0_30] : memref<2x1x32xf32, #tpu.memory_space<vmem>>, vector<1x1x32xf32>
    %64 = vector.shape_cast %63 : vector<1x1x32xf32> to vector<1x32xf32>
    %65 = vector.extract_strided_slice %56 {offsets = [0, 0, 0], sizes = [2, 8, 16], strides = [1, 1, 1]} : vector<2x8x32xf32> to vector<2x8x16xf32>
    %66 = vector.extract_strided_slice %58 {offsets = [0, 0, 0], sizes = [2, 8, 16], strides = [1, 1, 1]} : vector<2x8x32xf32> to vector<2x8x16xf32>
    "tpu.trace_start"() <{level = 10 : i32, message = "bqd,bkd->bqk"}> : () -> ()
    %cst_31 = arith.constant dense<0.000000e+00> : vector<2x8x8xf32>
    %67 = tpu.matmul %65, %66, %cst_31 {dimension_numbers = #tpu.dot_dimension_numbers<[2], [2], [1], [1], [0, 0, 0, 1, 1, 1], [0], [0]>} : vector<2x8x16xf32>, vector<2x8x16xf32>, vector<2x8x8xf32> -> vector<2x8x8xf32>
    "tpu.trace_stop"() : () -> ()
    %cst_32 = arith.constant 2.500000e-01 : f32
    %68 = vector.broadcast %cst_32 : f32 to vector<2x8x8xf32>
    %69 = arith.mulf %67, %68 : vector<2x8x8xf32>
    %70 = arith.addf %69, %47 : vector<2x8x8xf32>
    %cst_33 = arith.constant dense<0xFF800000> : vector<2x8xf32>
    %71 = vector.multi_reduction <maximumf>, %70, %cst_33 [2] : vector<2x8x8xf32> to vector<2x8xf32>
    %72 = vector.shape_cast %71 : vector<2x8xf32> to vector<2x8x1xf32>
    %73 = vector.broadcast %72 : vector<2x8x1xf32> to vector<2x8x8xf32>
    %74 = arith.subf %70, %73 : vector<2x8x8xf32>
    %75 = math.exp %74 : vector<2x8x8xf32>
    %cst_34 = arith.constant dense<0.000000e+00> : vector<2x8xf32>
    %76 = vector.multi_reduction <add>, %75, %cst_34 [2] : vector<2x8x8xf32> to vector<2x8xf32>
    %77 = vector.shape_cast %76 : vector<2x8xf32> to vector<2x8x1xf32>
    %78 = tpu.reciprocal %77 {approx = true} : vector<2x8x1xf32> -> vector<2x8x1xf32>
    %79 = vector.broadcast %78 : vector<2x8x1xf32> to vector<2x8x8xf32>
    %80 = arith.mulf %75, %79 : vector<2x8x8xf32>
    %81 = vector.extract_strided_slice %60 {offsets = [0, 0, 0], sizes = [2, 8, 16], strides = [1, 1, 1]} : vector<2x8x32xf32> to vector<2x8x16xf32>
    "tpu.trace_start"() <{level = 10 : i32, message = "bqk,bkd->bqd"}> : () -> ()
    %cst_35 = arith.constant dense<0.000000e+00> : vector<2x8x16xf32>
    %82 = tpu.matmul %80, %81, %cst_35 {dimension_numbers = #tpu.dot_dimension_numbers<[2], [1], [1], [2], [0, 0, 0, 1, 1, 2], [0], [0]>} : vector<2x8x8xf32>, vector<2x8x16xf32>, vector<2x8x16xf32> -> vector<2x8x16xf32>
    "tpu.trace_stop"() : () -> ()
    %83 = vector.shape_cast %82 : vector<2x8x16xf32> to vector<16x16xf32>
    %84 = vector.extract_strided_slice %62 {offsets = [0, 0], sizes = [16, 32], strides = [1, 1]} : vector<32x32xf32> to vector<16x32xf32>
    %cst_36 = arith.constant dense<0.000000e+00> : vector<16x32xf32>
    %85 = tpu.matmul %83, %84, %cst_36 {dimension_numbers = #tpu.dot_dimension_numbers<[1], [0], [0], [1], [0, 0, 1, 1], [], []>} : vector<16x16xf32>, vector<16x32xf32>, vector<16x32xf32> -> vector<16x32xf32>
    %86 = vector.broadcast %64 : vector<1x32xf32> to vector<16x32xf32>
    %87 = arith.addf %86, %85 : vector<16x32xf32>
    %88 = vector.extract_strided_slice %56 {offsets = [0, 0, 16], sizes = [2, 8, 16], strides = [1, 1, 1]} : vector<2x8x32xf32> to vector<2x8x16xf32>
    %89 = vector.extract_strided_slice %58 {offsets = [0, 0, 16], sizes = [2, 8, 16], strides = [1, 1, 1]} : vector<2x8x32xf32> to vector<2x8x16xf32>
    "tpu.trace_start"() <{level = 10 : i32, message = "bqd,bkd->bqk"}> : () -> ()
    %cst_37 = arith.constant dense<0.000000e+00> : vector<2x8x8xf32>
    %90 = tpu.matmul %88, %89, %cst_37 {dimension_numbers = #tpu.dot_dimension_numbers<[2], [2], [1], [1], [0, 0, 0, 1, 1, 1], [0], [0]>} : vector<2x8x16xf32>, vector<2x8x16xf32>, vector<2x8x8xf32> -> vector<2x8x8xf32>
    "tpu.trace_stop"() : () -> ()
    %cst_38 = arith.constant 2.500000e-01 : f32
    %91 = vector.broadcast %cst_38 : f32 to vector<2x8x8xf32>
    %92 = arith.mulf %90, %91 : vector<2x8x8xf32>
    %93 = arith.addf %92, %47 : vector<2x8x8xf32>
    %cst_39 = arith.constant dense<0xFF800000> : vector<2x8xf32>
    %94 = vector.multi_reduction <maximumf>, %93, %cst_39 [2] : vector<2x8x8xf32> to vector<2x8xf32>
    %95 = vector.shape_cast %94 : vector<2x8xf32> to vector<2x8x1xf32>
    %96 = vector.broadcast %95 : vector<2x8x1xf32> to vector<2x8x8xf32>
    %97 = arith.subf %93, %96 : vector<2x8x8xf32>
    %98 = math.exp %97 : vector<2x8x8xf32>
    %cst_40 = arith.constant dense<0.000000e+00> : vector<2x8xf32>
    %99 = vector.multi_reduction <add>, %98, %cst_40 [2] : vector<2x8x8xf32> to vector<2x8xf32>
    %100 = vector.shape_cast %99 : vector<2x8xf32> to vector<2x8x1xf32>
    %101 = tpu.reciprocal %100 {approx = true} : vector<2x8x1xf32> -> vector<2x8x1xf32>
    %102 = vector.broadcast %101 : vector<2x8x1xf32> to vector<2x8x8xf32>
    %103 = arith.mulf %98, %102 : vector<2x8x8xf32>
    %104 = vector.extract_strided_slice %60 {offsets = [0, 0, 16], sizes = [2, 8, 16], strides = [1, 1, 1]} : vector<2x8x32xf32> to vector<2x8x16xf32>
    "tpu.trace_start"() <{level = 10 : i32, message = "bqk,bkd->bqd"}> : () -> ()
    %cst_41 = arith.constant dense<0.000000e+00> : vector<2x8x16xf32>
    %105 = tpu.matmul %103, %104, %cst_41 {dimension_numbers = #tpu.dot_dimension_numbers<[2], [1], [1], [2], [0, 0, 0, 1, 1, 2], [0], [0]>} : vector<2x8x8xf32>, vector<2x8x16xf32>, vector<2x8x16xf32> -> vector<2x8x16xf32>
    "tpu.trace_stop"() : () -> ()
    %106 = vector.shape_cast %105 : vector<2x8x16xf32> to vector<16x16xf32>
    %107 = vector.extract_strided_slice %62 {offsets = [16, 0], sizes = [16, 32], strides = [1, 1]} : vector<32x32xf32> to vector<16x32xf32>
    %cst_42 = arith.constant dense<0.000000e+00> : vector<16x32xf32>
    %108 = tpu.matmul %106, %107, %cst_42 {dimension_numbers = #tpu.dot_dimension_numbers<[1], [0], [0], [1], [0, 0, 1, 1], [], []>} : vector<16x16xf32>, vector<16x32xf32>, vector<16x32xf32> -> vector<16x32xf32>
    %109 = arith.addf %87, %108 : vector<16x32xf32>
    %110 = arith.addf %39, %109 : vector<16x32xf32>
    %c0_43 = arith.constant 0 : index
    %c0_44 = arith.constant 0 : index
    %c0_45 = arith.constant 0 : index
    %111 = vector.load %arg11[%c0_43, %c0_44, %c0_45] : memref<2x1x32xf32, #tpu.memory_space<vmem>>, vector<1x1x32xf32>
    %112 = vector.shape_cast %111 : vector<1x1x32xf32> to vector<1x32xf32>
    %c0_46 = arith.constant 0 : index
    %c0_47 = arith.constant 0 : index
    %c0_48 = arith.constant 0 : index
    %113 = vector.load %arg12[%c0_46, %c0_47, %c0_48] : memref<2x1x32xf32, #tpu.memory_space<vmem>>, vector<1x1x32xf32>
    %114 = vector.shape_cast %113 : vector<1x1x32xf32> to vector<1x32xf32>
    %cst_49 = arith.constant dense<0.000000e+00> : vector<16xf32>
    %115 = vector.multi_reduction <add>, %110, %cst_49 [1] : vector<16x32xf32> to vector<16xf32>
    %116 = vector.shape_cast %115 : vector<16xf32> to vector<16x1xf32>
    %cst_50 = arith.constant 3.200000e+01 : f32
    %117 = vector.broadcast %cst_50 : f32 to vector<16x1xf32>
    %118 = arith.divf %116, %117 : vector<16x1xf32>
    %119 = vector.broadcast %118 : vector<16x1xf32> to vector<16x32xf32>
    %120 = arith.subf %110, %119 : vector<16x32xf32>
    %121 = arith.mulf %120, %120 : vector<16x32xf32>
    %cst_51 = arith.constant dense<0.000000e+00> : vector<16xf32>
    %122 = vector.multi_reduction <add>, %121, %cst_51 [1] : vector<16x32xf32> to vector<16xf32>
    %123 = vector.shape_cast %122 : vector<16xf32> to vector<16x1xf32>
    %cst_52 = arith.constant 3.200000e+01 : f32
    %124 = vector.broadcast %cst_52 : f32 to vector<16x1xf32>
    %125 = arith.divf %123, %124 : vector<16x1xf32>
    %126 = vector.broadcast %118 : vector<16x1xf32> to vector<16x32xf32>
    %127 = arith.subf %110, %126 : vector<16x32xf32>
    %cst_53 = arith.constant 9.99999996E-13 : f32
    %128 = vector.broadcast %cst_53 : f32 to vector<16x1xf32>
    %129 = arith.addf %125, %128 : vector<16x1xf32>
    %130 = math.rsqrt %129 : vector<16x1xf32>
    %131 = vector.broadcast %130 : vector<16x1xf32> to vector<16x32xf32>
    %132 = arith.mulf %127, %131 : vector<16x32xf32>
    %133 = vector.broadcast %112 : vector<1x32xf32> to vector<16x32xf32>
    %134 = arith.mulf %132, %133 : vector<16x32xf32>
    %135 = vector.broadcast %114 : vector<1x32xf32> to vector<16x32xf32>
    %136 = arith.addf %134, %135 : vector<16x32xf32>
    %c0_54 = arith.constant 0 : index
    %c0_55 = arith.constant 0 : index
    %c0_56 = arith.constant 0 : index
    %137 = vector.load %arg13[%c0_54, %c0_55, %c0_56] : memref<2x32x64xf32, #tpu.memory_space<vmem>>, vector<1x32x64xf32>
    %138 = vector.shape_cast %137 : vector<1x32x64xf32> to vector<32x64xf32>
    %cst_57 = arith.constant dense<0.000000e+00> : vector<16x64xf32>
    %139 = tpu.matmul %136, %138, %cst_57 {dimension_numbers = #tpu.dot_dimension_numbers<[1], [0], [0], [1], [0, 0, 1, 1], [], []>} : vector<16x32xf32>, vector<32x64xf32>, vector<16x64xf32> -> vector<16x64xf32>
    %c0_58 = arith.constant 0 : index
    %c0_59 = arith.constant 0 : index
    %c0_60 = arith.constant 0 : index
    %140 = vector.load %arg14[%c0_58, %c0_59, %c0_60] : memref<2x1x64xf32, #tpu.memory_space<vmem>>, vector<1x1x64xf32>
    %141 = vector.shape_cast %140 : vector<1x1x64xf32> to vector<1x64xf32>
    %142 = vector.broadcast %141 : vector<1x64xf32> to vector<16x64xf32>
    %143 = arith.addf %139, %142 : vector<16x64xf32>
    %144 = arith.mulf %143, %143 : vector<16x64xf32>
    %145 = arith.mulf %143, %144 : vector<16x64xf32>
    %cst_61 = arith.constant 4.471500e-02 : f32
    %146 = vector.broadcast %cst_61 : f32 to vector<16x64xf32>
    %147 = arith.mulf %146, %145 : vector<16x64xf32>
    %148 = arith.addf %143, %147 : vector<16x64xf32>
    %cst_62 = arith.constant 0.797884583 : f32
    %149 = vector.broadcast %cst_62 : f32 to vector<16x64xf32>
    %150 = arith.mulf %149, %148 : vector<16x64xf32>
    %151 = math.tanh %150 : vector<16x64xf32>
    %cst_63 = arith.constant 1.000000e+00 : f32
    %152 = vector.broadcast %cst_63 : f32 to vector<16x64xf32>
    %153 = arith.addf %152, %151 : vector<16x64xf32>
    %cst_64 = arith.constant 5.000000e-01 : f32
    %154 = vector.broadcast %cst_64 : f32 to vector<16x64xf32>
    %155 = arith.mulf %154, %153 : vector<16x64xf32>
    %156 = arith.mulf %143, %155 : vector<16x64xf32>
    %c0_65 = arith.constant 0 : index
    %c0_66 = arith.constant 0 : index
    %c0_67 = arith.constant 0 : index
    %157 = vector.load %arg15[%c0_65, %c0_66, %c0_67] : memref<2x64x32xf32, #tpu.memory_space<vmem>>, vector<1x64x32xf32>
    %158 = vector.shape_cast %157 : vector<1x64x32xf32> to vector<64x32xf32>
    %cst_68 = arith.constant dense<0.000000e+00> : vector<16x32xf32>
    %159 = tpu.matmul %156, %158, %cst_68 {dimension_numbers = #tpu.dot_dimension_numbers<[1], [0], [0], [1], [0, 0, 1, 1], [], []>} : vector<16x64xf32>, vector<64x32xf32>, vector<16x32xf32> -> vector<16x32xf32>
    %c0_69 = arith.constant 0 : index
    %c0_70 = arith.constant 0 : index
    %c0_71 = arith.constant 0 : index
    %160 = vector.load %arg16[%c0_69, %c0_70, %c0_71] : memref<2x1x32xf32, #tpu.memory_space<vmem>>, vector<1x1x32xf32>
    %161 = vector.shape_cast %160 : vector<1x1x32xf32> to vector<1x32xf32>
    %162 = vector.broadcast %161 : vector<1x32xf32> to vector<16x32xf32>
    %163 = arith.addf %159, %162 : vector<16x32xf32>
    %164 = arith.addf %136, %163 : vector<16x32xf32>
    %c0_72 = arith.constant 0 : index
    %c0_73 = arith.constant 0 : index
    %c0_74 = arith.constant 0 : index
    %165 = vector.load %arg17[%c0_72, %c0_73, %c0_74] : memref<2x1x32xf32, #tpu.memory_space<vmem>>, vector<1x1x32xf32>
    %166 = vector.shape_cast %165 : vector<1x1x32xf32> to vector<1x32xf32>
    %c0_75 = arith.constant 0 : index
    %c0_76 = arith.constant 0 : index
    %c0_77 = arith.constant 0 : index
    %167 = vector.load %arg18[%c0_75, %c0_76, %c0_77] : memref<2x1x32xf32, #tpu.memory_space<vmem>>, vector<1x1x32xf32>
    %168 = vector.shape_cast %167 : vector<1x1x32xf32> to vector<1x32xf32>
    %cst_78 = arith.constant dense<0.000000e+00> : vector<16xf32>
    %169 = vector.multi_reduction <add>, %164, %cst_78 [1] : vector<16x32xf32> to vector<16xf32>
    %170 = vector.shape_cast %169 : vector<16xf32> to vector<16x1xf32>
    %cst_79 = arith.constant 3.200000e+01 : f32
    %171 = vector.broadcast %cst_79 : f32 to vector<16x1xf32>
    %172 = arith.divf %170, %171 : vector<16x1xf32>
    %173 = vector.broadcast %172 : vector<16x1xf32> to vector<16x32xf32>
    %174 = arith.subf %164, %173 : vector<16x32xf32>
    %175 = arith.mulf %174, %174 : vector<16x32xf32>
    %cst_80 = arith.constant dense<0.000000e+00> : vector<16xf32>
    %176 = vector.multi_reduction <add>, %175, %cst_80 [1] : vector<16x32xf32> to vector<16xf32>
    %177 = vector.shape_cast %176 : vector<16xf32> to vector<16x1xf32>
    %cst_81 = arith.constant 3.200000e+01 : f32
    %178 = vector.broadcast %cst_81 : f32 to vector<16x1xf32>
    %179 = arith.divf %177, %178 : vector<16x1xf32>
    %180 = vector.broadcast %172 : vector<16x1xf32> to vector<16x32xf32>
    %181 = arith.subf %164, %180 : vector<16x32xf32>
    %cst_82 = arith.constant 9.99999996E-13 : f32
    %182 = vector.broadcast %cst_82 : f32 to vector<16x1xf32>
    %183 = arith.addf %179, %182 : vector<16x1xf32>
    %184 = math.rsqrt %183 : vector<16x1xf32>
    %185 = vector.broadcast %184 : vector<16x1xf32> to vector<16x32xf32>
    %186 = arith.mulf %181, %185 : vector<16x32xf32>
    %187 = vector.broadcast %166 : vector<1x32xf32> to vector<16x32xf32>
    %188 = arith.mulf %186, %187 : vector<16x32xf32>
    %189 = vector.broadcast %168 : vector<1x32xf32> to vector<16x32xf32>
    %190 = arith.addf %188, %189 : vector<16x32xf32>
    %c1 = arith.constant 1 : index
    %c0_83 = arith.constant 0 : index
    %c0_84 = arith.constant 0 : index
    %191 = vector.load %arg7[%c1, %c0_83, %c0_84] : memref<2x32x96xf32, #tpu.memory_space<vmem>>, vector<1x32x96xf32>
    %192 = vector.shape_cast %191 : vector<1x32x96xf32> to vector<32x96xf32>
    %cst_85 = arith.constant dense<0.000000e+00> : vector<16x96xf32>
    %193 = tpu.matmul %190, %192, %cst_85 {dimension_numbers = #tpu.dot_dimension_numbers<[1], [0], [0], [1], [0, 0, 1, 1], [], []>} : vector<16x32xf32>, vector<32x96xf32>, vector<16x96xf32> -> vector<16x96xf32>
    %c1_86 = arith.constant 1 : index
    %c0_87 = arith.constant 0 : index
    %c0_88 = arith.constant 0 : index
    %194 = vector.load %arg8[%c1_86, %c0_87, %c0_88] : memref<2x1x96xf32, #tpu.memory_space<vmem>>, vector<1x1x96xf32>
    %195 = vector.shape_cast %194 : vector<1x1x96xf32> to vector<1x96xf32>
    %196 = vector.broadcast %195 : vector<1x96xf32> to vector<16x96xf32>
    %197 = arith.addf %193, %196 : vector<16x96xf32>
    %198 = vector.extract_strided_slice %197 {offsets = [0, 0], sizes = [16, 32], strides = [1, 1]} : vector<16x96xf32> to vector<16x32xf32>
    %199 = vector.shape_cast %198 : vector<16x32xf32> to vector<2x8x32xf32>
    %200 = vector.extract_strided_slice %197 {offsets = [0, 32], sizes = [16, 32], strides = [1, 1]} : vector<16x96xf32> to vector<16x32xf32>
    %201 = vector.shape_cast %200 : vector<16x32xf32> to vector<2x8x32xf32>
    %202 = vector.extract_strided_slice %197 {offsets = [0, 64], sizes = [16, 32], strides = [1, 1]} : vector<16x96xf32> to vector<16x32xf32>
    %203 = vector.shape_cast %202 : vector<16x32xf32> to vector<2x8x32xf32>
    %c1_89 = arith.constant 1 : index
    %c0_90 = arith.constant 0 : index
    %c0_91 = arith.constant 0 : index
    %204 = vector.load %arg9[%c1_89, %c0_90, %c0_91] : memref<2x32x32xf32, #tpu.memory_space<vmem>>, vector<1x32x32xf32>
    %205 = vector.shape_cast %204 : vector<1x32x32xf32> to vector<32x32xf32>
    %c1_92 = arith.constant 1 : index
    %c0_93 = arith.constant 0 : index
    %c0_94 = arith.constant 0 : index
    %206 = vector.load %arg10[%c1_92, %c0_93, %c0_94] : memref<2x1x32xf32, #tpu.memory_space<vmem>>, vector<1x1x32xf32>
    %207 = vector.shape_cast %206 : vector<1x1x32xf32> to vector<1x32xf32>
    %208 = vector.extract_strided_slice %199 {offsets = [0, 0, 0], sizes = [2, 8, 16], strides = [1, 1, 1]} : vector<2x8x32xf32> to vector<2x8x16xf32>
    %209 = vector.extract_strided_slice %201 {offsets = [0, 0, 0], sizes = [2, 8, 16], strides = [1, 1, 1]} : vector<2x8x32xf32> to vector<2x8x16xf32>
    "tpu.trace_start"() <{level = 10 : i32, message = "bqd,bkd->bqk"}> : () -> ()
    %cst_95 = arith.constant dense<0.000000e+00> : vector<2x8x8xf32>
    %210 = tpu.matmul %208, %209, %cst_95 {dimension_numbers = #tpu.dot_dimension_numbers<[2], [2], [1], [1], [0, 0, 0, 1, 1, 1], [0], [0]>} : vector<2x8x16xf32>, vector<2x8x16xf32>, vector<2x8x8xf32> -> vector<2x8x8xf32>
    "tpu.trace_stop"() : () -> ()
    %cst_96 = arith.constant 2.500000e-01 : f32
    %211 = vector.broadcast %cst_96 : f32 to vector<2x8x8xf32>
    %212 = arith.mulf %210, %211 : vector<2x8x8xf32>
    %213 = arith.addf %212, %47 : vector<2x8x8xf32>
    %cst_97 = arith.constant dense<0xFF800000> : vector<2x8xf32>
    %214 = vector.multi_reduction <maximumf>, %213, %cst_97 [2] : vector<2x8x8xf32> to vector<2x8xf32>
    %215 = vector.shape_cast %214 : vector<2x8xf32> to vector<2x8x1xf32>
    %216 = vector.broadcast %215 : vector<2x8x1xf32> to vector<2x8x8xf32>
    %217 = arith.subf %213, %216 : vector<2x8x8xf32>
    %218 = math.exp %217 : vector<2x8x8xf32>
    %cst_98 = arith.constant dense<0.000000e+00> : vector<2x8xf32>
    %219 = vector.multi_reduction <add>, %218, %cst_98 [2] : vector<2x8x8xf32> to vector<2x8xf32>
    %220 = vector.shape_cast %219 : vector<2x8xf32> to vector<2x8x1xf32>
    %221 = tpu.reciprocal %220 {approx = true} : vector<2x8x1xf32> -> vector<2x8x1xf32>
    %222 = vector.broadcast %221 : vector<2x8x1xf32> to vector<2x8x8xf32>
    %223 = arith.mulf %218, %222 : vector<2x8x8xf32>
    %224 = vector.extract_strided_slice %203 {offsets = [0, 0, 0], sizes = [2, 8, 16], strides = [1, 1, 1]} : vector<2x8x32xf32> to vector<2x8x16xf32>
    "tpu.trace_start"() <{level = 10 : i32, message = "bqk,bkd->bqd"}> : () -> ()
    %cst_99 = arith.constant dense<0.000000e+00> : vector<2x8x16xf32>
    %225 = tpu.matmul %223, %224, %cst_99 {dimension_numbers = #tpu.dot_dimension_numbers<[2], [1], [1], [2], [0, 0, 0, 1, 1, 2], [0], [0]>} : vector<2x8x8xf32>, vector<2x8x16xf32>, vector<2x8x16xf32> -> vector<2x8x16xf32>
    "tpu.trace_stop"() : () -> ()
    %226 = vector.shape_cast %225 : vector<2x8x16xf32> to vector<16x16xf32>
    %227 = vector.extract_strided_slice %205 {offsets = [0, 0], sizes = [16, 32], strides = [1, 1]} : vector<32x32xf32> to vector<16x32xf32>
    %cst_100 = arith.constant dense<0.000000e+00> : vector<16x32xf32>
    %228 = tpu.matmul %226, %227, %cst_100 {dimension_numbers = #tpu.dot_dimension_numbers<[1], [0], [0], [1], [0, 0, 1, 1], [], []>} : vector<16x16xf32>, vector<16x32xf32>, vector<16x32xf32> -> vector<16x32xf32>
    %229 = vector.broadcast %207 : vector<1x32xf32> to vector<16x32xf32>
    %230 = arith.addf %229, %228 : vector<16x32xf32>
    %231 = vector.extract_strided_slice %199 {offsets = [0, 0, 16], sizes = [2, 8, 16], strides = [1, 1, 1]} : vector<2x8x32xf32> to vector<2x8x16xf32>
    %232 = vector.extract_strided_slice %201 {offsets = [0, 0, 16], sizes = [2, 8, 16], strides = [1, 1, 1]} : vector<2x8x32xf32> to vector<2x8x16xf32>
    "tpu.trace_start"() <{level = 10 : i32, message = "bqd,bkd->bqk"}> : () -> ()
    %cst_101 = arith.constant dense<0.000000e+00> : vector<2x8x8xf32>
    %233 = tpu.matmul %231, %232, %cst_101 {dimension_numbers = #tpu.dot_dimension_numbers<[2], [2], [1], [1], [0, 0, 0, 1, 1, 1], [0], [0]>} : vector<2x8x16xf32>, vector<2x8x16xf32>, vector<2x8x8xf32> -> vector<2x8x8xf32>
    "tpu.trace_stop"() : () -> ()
    %cst_102 = arith.constant 2.500000e-01 : f32
    %234 = vector.broadcast %cst_102 : f32 to vector<2x8x8xf32>
    %235 = arith.mulf %233, %234 : vector<2x8x8xf32>
    %236 = arith.addf %235, %47 : vector<2x8x8xf32>
    %cst_103 = arith.constant dense<0xFF800000> : vector<2x8xf32>
    %237 = vector.multi_reduction <maximumf>, %236, %cst_103 [2] : vector<2x8x8xf32> to vector<2x8xf32>
    %238 = vector.shape_cast %237 : vector<2x8xf32> to vector<2x8x1xf32>
    %239 = vector.broadcast %238 : vector<2x8x1xf32> to vector<2x8x8xf32>
    %240 = arith.subf %236, %239 : vector<2x8x8xf32>
    %241 = math.exp %240 : vector<2x8x8xf32>
    %cst_104 = arith.constant dense<0.000000e+00> : vector<2x8xf32>
    %242 = vector.multi_reduction <add>, %241, %cst_104 [2] : vector<2x8x8xf32> to vector<2x8xf32>
    %243 = vector.shape_cast %242 : vector<2x8xf32> to vector<2x8x1xf32>
    %244 = tpu.reciprocal %243 {approx = true} : vector<2x8x1xf32> -> vector<2x8x1xf32>
    %245 = vector.broadcast %244 : vector<2x8x1xf32> to vector<2x8x8xf32>
    %246 = arith.mulf %241, %245 : vector<2x8x8xf32>
    %247 = vector.extract_strided_slice %203 {offsets = [0, 0, 16], sizes = [2, 8, 16], strides = [1, 1, 1]} : vector<2x8x32xf32> to vector<2x8x16xf32>
    "tpu.trace_start"() <{level = 10 : i32, message = "bqk,bkd->bqd"}> : () -> ()
    %cst_105 = arith.constant dense<0.000000e+00> : vector<2x8x16xf32>
    %248 = tpu.matmul %246, %247, %cst_105 {dimension_numbers = #tpu.dot_dimension_numbers<[2], [1], [1], [2], [0, 0, 0, 1, 1, 2], [0], [0]>} : vector<2x8x8xf32>, vector<2x8x16xf32>, vector<2x8x16xf32> -> vector<2x8x16xf32>
    "tpu.trace_stop"() : () -> ()
    %249 = vector.shape_cast %248 : vector<2x8x16xf32> to vector<16x16xf32>
    %250 = vector.extract_strided_slice %205 {offsets = [16, 0], sizes = [16, 32], strides = [1, 1]} : vector<32x32xf32> to vector<16x32xf32>
    %cst_106 = arith.constant dense<0.000000e+00> : vector<16x32xf32>
    %251 = tpu.matmul %249, %250, %cst_106 {dimension_numbers = #tpu.dot_dimension_numbers<[1], [0], [0], [1], [0, 0, 1, 1], [], []>} : vector<16x16xf32>, vector<16x32xf32>, vector<16x32xf32> -> vector<16x32xf32>
    %252 = arith.addf %230, %251 : vector<16x32xf32>
    %253 = arith.addf %190, %252 : vector<16x32xf32>
    %c1_107 = arith.constant 1 : index
    %c0_108 = arith.constant 0 : index
    %c0_109 = arith.constant 0 : index
    %254 = vector.load %arg11[%c1_107, %c0_108, %c0_109] : memref<2x1x32xf32, #tpu.memory_space<vmem>>, vector<1x1x32xf32>
    %255 = vector.shape_cast %254 : vector<1x1x32xf32> to vector<1x32xf32>
    %c1_110 = arith.constant 1 : index
    %c0_111 = arith.constant 0 : index
    %c0_112 = arith.constant 0 : index
    %256 = vector.load %arg12[%c1_110, %c0_111, %c0_112] : memref<2x1x32xf32, #tpu.memory_space<vmem>>, vector<1x1x32xf32>
    %257 = vector.shape_cast %256 : vector<1x1x32xf32> to vector<1x32xf32>
    %cst_113 = arith.constant dense<0.000000e+00> : vector<16xf32>
    %258 = vector.multi_reduction <add>, %253, %cst_113 [1] : vector<16x32xf32> to vector<16xf32>
    %259 = vector.shape_cast %258 : vector<16xf32> to vector<16x1xf32>
    %cst_114 = arith.constant 3.200000e+01 : f32
    %260 = vector.broadcast %cst_114 : f32 to vector<16x1xf32>
    %261 = arith.divf %259, %260 : vector<16x1xf32>
    %262 = vector.broadcast %261 : vector<16x1xf32> to vector<16x32xf32>
    %263 = arith.subf %253, %262 : vector<16x32xf32>
    %264 = arith.mulf %263, %263 : vector<16x32xf32>
    %cst_115 = arith.constant dense<0.000000e+00> : vector<16xf32>
    %265 = vector.multi_reduction <add>, %264, %cst_115 [1] : vector<16x32xf32> to vector<16xf32>
    %266 = vector.shape_cast %265 : vector<16xf32> to vector<16x1xf32>
    %cst_116 = arith.constant 3.200000e+01 : f32
    %267 = vector.broadcast %cst_116 : f32 to vector<16x1xf32>
    %268 = arith.divf %266, %267 : vector<16x1xf32>
    %269 = vector.broadcast %261 : vector<16x1xf32> to vector<16x32xf32>
    %270 = arith.subf %253, %269 : vector<16x32xf32>
    %cst_117 = arith.constant 9.99999996E-13 : f32
    %271 = vector.broadcast %cst_117 : f32 to vector<16x1xf32>
    %272 = arith.addf %268, %271 : vector<16x1xf32>
    %273 = math.rsqrt %272 : vector<16x1xf32>
    %274 = vector.broadcast %273 : vector<16x1xf32> to vector<16x32xf32>
    %275 = arith.mulf %270, %274 : vector<16x32xf32>
    %276 = vector.broadcast %255 : vector<1x32xf32> to vector<16x32xf32>
    %277 = arith.mulf %275, %276 : vector<16x32xf32>
    %278 = vector.broadcast %257 : vector<1x32xf32> to vector<16x32xf32>
    %279 = arith.addf %277, %278 : vector<16x32xf32>
    %c1_118 = arith.constant 1 : index
    %c0_119 = arith.constant 0 : index
    %c0_120 = arith.constant 0 : index
    %280 = vector.load %arg13[%c1_118, %c0_119, %c0_120] : memref<2x32x64xf32, #tpu.memory_space<vmem>>, vector<1x32x64xf32>
    %281 = vector.shape_cast %280 : vector<1x32x64xf32> to vector<32x64xf32>
    %cst_121 = arith.constant dense<0.000000e+00> : vector<16x64xf32>
    %282 = tpu.matmul %279, %281, %cst_121 {dimension_numbers = #tpu.dot_dimension_numbers<[1], [0], [0], [1], [0, 0, 1, 1], [], []>} : vector<16x32xf32>, vector<32x64xf32>, vector<16x64xf32> -> vector<16x64xf32>
    %c1_122 = arith.constant 1 : index
    %c0_123 = arith.constant 0 : index
    %c0_124 = arith.constant 0 : index
    %283 = vector.load %arg14[%c1_122, %c0_123, %c0_124] : memref<2x1x64xf32, #tpu.memory_space<vmem>>, vector<1x1x64xf32>
    %284 = vector.shape_cast %283 : vector<1x1x64xf32> to vector<1x64xf32>
    %285 = vector.broadcast %284 : vector<1x64xf32> to vector<16x64xf32>
    %286 = arith.addf %282, %285 : vector<16x64xf32>
    %287 = arith.mulf %286, %286 : vector<16x64xf32>
    %288 = arith.mulf %286, %287 : vector<16x64xf32>
    %cst_125 = arith.constant 4.471500e-02 : f32
    %289 = vector.broadcast %cst_125 : f32 to vector<16x64xf32>
    %290 = arith.mulf %289, %288 : vector<16x64xf32>
    %291 = arith.addf %286, %290 : vector<16x64xf32>
    %cst_126 = arith.constant 0.797884583 : f32
    %292 = vector.broadcast %cst_126 : f32 to vector<16x64xf32>
    %293 = arith.mulf %292, %291 : vector<16x64xf32>
    %294 = math.tanh %293 : vector<16x64xf32>
    %cst_127 = arith.constant 1.000000e+00 : f32
    %295 = vector.broadcast %cst_127 : f32 to vector<16x64xf32>
    %296 = arith.addf %295, %294 : vector<16x64xf32>
    %cst_128 = arith.constant 5.000000e-01 : f32
    %297 = vector.broadcast %cst_128 : f32 to vector<16x64xf32>
    %298 = arith.mulf %297, %296 : vector<16x64xf32>
    %299 = arith.mulf %286, %298 : vector<16x64xf32>
    %c1_129 = arith.constant 1 : index
    %c0_130 = arith.constant 0 : index
    %c0_131 = arith.constant 0 : index
    %300 = vector.load %arg15[%c1_129, %c0_130, %c0_131] : memref<2x64x32xf32, #tpu.memory_space<vmem>>, vector<1x64x32xf32>
    %301 = vector.shape_cast %300 : vector<1x64x32xf32> to vector<64x32xf32>
    %cst_132 = arith.constant dense<0.000000e+00> : vector<16x32xf32>
    %302 = tpu.matmul %299, %301, %cst_132 {dimension_numbers = #tpu.dot_dimension_numbers<[1], [0], [0], [1], [0, 0, 1, 1], [], []>} : vector<16x64xf32>, vector<64x32xf32>, vector<16x32xf32> -> vector<16x32xf32>
    %c1_133 = arith.constant 1 : index
    %c0_134 = arith.constant 0 : index
    %c0_135 = arith.constant 0 : index
    %303 = vector.load %arg16[%c1_133, %c0_134, %c0_135] : memref<2x1x32xf32, #tpu.memory_space<vmem>>, vector<1x1x32xf32>
    %304 = vector.shape_cast %303 : vector<1x1x32xf32> to vector<1x32xf32>
    %305 = vector.broadcast %304 : vector<1x32xf32> to vector<16x32xf32>
    %306 = arith.addf %302, %305 : vector<16x32xf32>
    %307 = arith.addf %279, %306 : vector<16x32xf32>
    %c1_136 = arith.constant 1 : index
    %c0_137 = arith.constant 0 : index
    %c0_138 = arith.constant 0 : index
    %308 = vector.load %arg17[%c1_136, %c0_137, %c0_138] : memref<2x1x32xf32, #tpu.memory_space<vmem>>, vector<1x1x32xf32>
    %309 = vector.shape_cast %308 : vector<1x1x32xf32> to vector<1x32xf32>
    %c1_139 = arith.constant 1 : index
    %c0_140 = arith.constant 0 : index
    %c0_141 = arith.constant 0 : index
    %310 = vector.load %arg18[%c1_139, %c0_140, %c0_141] : memref<2x1x32xf32, #tpu.memory_space<vmem>>, vector<1x1x32xf32>
    %311 = vector.shape_cast %310 : vector<1x1x32xf32> to vector<1x32xf32>
    %cst_142 = arith.constant dense<0.000000e+00> : vector<16xf32>
    %312 = vector.multi_reduction <add>, %307, %cst_142 [1] : vector<16x32xf32> to vector<16xf32>
    %313 = vector.shape_cast %312 : vector<16xf32> to vector<16x1xf32>
    %cst_143 = arith.constant 3.200000e+01 : f32
    %314 = vector.broadcast %cst_143 : f32 to vector<16x1xf32>
    %315 = arith.divf %313, %314 : vector<16x1xf32>
    %316 = vector.broadcast %315 : vector<16x1xf32> to vector<16x32xf32>
    %317 = arith.subf %307, %316 : vector<16x32xf32>
    %318 = arith.mulf %317, %317 : vector<16x32xf32>
    %cst_144 = arith.constant dense<0.000000e+00> : vector<16xf32>
    %319 = vector.multi_reduction <add>, %318, %cst_144 [1] : vector<16x32xf32> to vector<16xf32>
    %320 = vector.shape_cast %319 : vector<16xf32> to vector<16x1xf32>
    %cst_145 = arith.constant 3.200000e+01 : f32
    %321 = vector.broadcast %cst_145 : f32 to vector<16x1xf32>
    %322 = arith.divf %320, %321 : vector<16x1xf32>
    %323 = vector.broadcast %315 : vector<16x1xf32> to vector<16x32xf32>
    %324 = arith.subf %307, %323 : vector<16x32xf32>
    %cst_146 = arith.constant 9.99999996E-13 : f32
    %325 = vector.broadcast %cst_146 : f32 to vector<16x1xf32>
    %326 = arith.addf %322, %325 : vector<16x1xf32>
    %327 = math.rsqrt %326 : vector<16x1xf32>
    %328 = vector.broadcast %327 : vector<16x1xf32> to vector<16x32xf32>
    %329 = arith.mulf %324, %328 : vector<16x32xf32>
    %330 = vector.broadcast %309 : vector<1x32xf32> to vector<16x32xf32>
    %331 = arith.mulf %329, %330 : vector<16x32xf32>
    %332 = vector.broadcast %311 : vector<1x32xf32> to vector<16x32xf32>
    %333 = arith.addf %331, %332 : vector<16x32xf32>
    %334 = vector.shape_cast %333 : vector<16x32xf32> to vector<2x8x32xf32>
    %335 = vector.extract_strided_slice %334 {offsets = [0, 0, 0], sizes = [2, 1, 32], strides = [1, 1, 1]} : vector<2x8x32xf32> to vector<2x1x32xf32>
    %336 = vector.shape_cast %335 : vector<2x1x32xf32> to vector<2x32xf32>
    %c0_147 = arith.constant 0 : index
    %c0_148 = arith.constant 0 : index
    %337 = vector.load %arg19[%c0_147, %c0_148] : memref<32x32xf32, #tpu.memory_space<vmem>>, vector<32x32xf32>
    %cst_149 = arith.constant dense<0.000000e+00> : vector<2x32xf32>
    %338 = tpu.matmul %336, %337, %cst_149 {dimension_numbers = #tpu.dot_dimension_numbers<[1], [0], [0], [1], [0, 0, 1, 1], [], []>} : vector<2x32xf32>, vector<32x32xf32>, vector<2x32xf32> -> vector<2x32xf32>
    %c0_150 = arith.constant 0 : index
    %c0_151 = arith.constant 0 : index
    %339 = vector.load %arg20[%c0_150, %c0_151] : memref<1x32xf32, #tpu.memory_space<vmem>>, vector<1x32xf32>
    %340 = vector.broadcast %339 : vector<1x32xf32> to vector<2x32xf32>
    %341 = arith.addf %338, %340 : vector<2x32xf32>
    %342 = math.tanh %341 : vector<2x32xf32>
    %c0_152 = arith.constant 0 : index
    %c0_153 = arith.constant 0 : index
    %343 = vector.load %arg21[%c0_152, %c0_153] : memref<32x128xf32, #tpu.memory_space<vmem>>, vector<32x128xf32>
    %cst_154 = arith.constant dense<0.000000e+00> : vector<2x128xf32>
    %344 = tpu.matmul %342, %343, %cst_154 {dimension_numbers = #tpu.dot_dimension_numbers<[1], [0], [0], [1], [0, 0, 1, 1], [], []>} : vector<2x32xf32>, vector<32x128xf32>, vector<2x128xf32> -> vector<2x128xf32>
    %c0_155 = arith.constant 0 : index
    %c0_156 = arith.constant 0 : index
    %345 = vector.load %arg22[%c0_155, %c0_156] : memref<1x128xf32, #tpu.memory_space<vmem>>, vector<1x128xf32>
    %346 = vector.broadcast %345 : vector<1x128xf32> to vector<2x128xf32>
    %347 = arith.addf %344, %346 : vector<2x128xf32>
    %c0_157 = arith.constant 0 : index
    %c0_158 = arith.constant 0 : index
    %348 = vector.load %arg23[%c0_157, %c0_158] : memref<2x128xf32, #tpu.memory_space<vmem>>, vector<2x128xf32>
    tpu.vector_store %arg23[%c0_157, %c0_158], %347 {strides = array<i32>} : memref<2x128xf32, #tpu.memory_space<vmem>>, vector<2x128xf32>,
    %349 = tpu.iota {dimensions = array<i32: 1>} : vector<2x128xi32>
    %c0_159 = arith.constant 0 : index
    %c0_160 = arith.constant 0 : index
    %350 = vector.load %arg2[%c0_159, %c0_160] : memref<2x1xi32, #tpu.memory_space<vmem>>, vector<2x1xi32>
    %351 = vector.broadcast %350 : vector<2x1xi32> to vector<2x128xi32>
    %352 = arith.cmpi eq, %349, %351 : vector<2x128xi32>
    %353 = arith.extui %352 : vector<2x128xi1> to vector<2x128xi32>
    %354 = arith.sitofp %353 : vector<2x128xi32> to vector<2x128xf32>
    %cst_161 = arith.constant dense<0xFF800000> : vector<2xf32>
    %355 = vector.multi_reduction <maximumf>, %347, %cst_161 [1] : vector<2x128xf32> to vector<2xf32>
    %356 = vector.shape_cast %355 : vector<2xf32> to vector<2x1xf32>
    %357 = vector.broadcast %356 : vector<2x1xf32> to vector<2x128xf32>
    %358 = arith.subf %347, %357 : vector<2x128xf32>
    %359 = math.exp %358 : vector<2x128xf32>
    %cst_162 = arith.constant dense<0.000000e+00> : vector<2xf32>
    %360 = vector.multi_reduction <add>, %359, %cst_162 [1] : vector<2x128xf32> to vector<2xf32>
    %361 = vector.shape_cast %360 : vector<2xf32> to vector<2x1xf32>
    %362 = math.log %361 : vector<2x1xf32>
    %363 = arith.addf %356, %362 : vector<2x1xf32>
    %364 = vector.broadcast %363 : vector<2x1xf32> to vector<2x128xf32>
    %365 = arith.subf %364, %347 : vector<2x128xf32>
    %366 = arith.mulf %354, %365 : vector<2x128xf32>
    %cst_163 = arith.constant dense<0.000000e+00> : vector<2xf32>
    %367 = vector.multi_reduction <add>, %366, %cst_163 [1] : vector<2x128xf32> to vector<2xf32>
    %368 = vector.shape_cast %367 : vector<2xf32> to vector<2x1xf32>
    %369 = vector.shape_cast %368 : vector<2x1xf32> to vector<1x2x1xf32>
    %cst_164 = arith.constant dense<0.000000e+00> : vector<1xf32>
    %370 = vector.multi_reduction <add>, %369, %cst_164 [1, 2] : vector<1x2x1xf32> to vector<1xf32>
    %371 = vector.shape_cast %370 : vector<1xf32> to vector<1x1x1xf32>
    %372 = vector.extract %371[0, 0, 0] : f32 from vector<1x1x1xf32>
    %cst_165 = arith.constant 5.000000e-01 : f32
    %373 = arith.mulf %372, %cst_165 : f32
    %c0_166 = arith.constant 0 : index
    %c0_167 = arith.constant 0 : index
    %374 = memref.load %arg24[%c0_166, %c0_167] : memref<1x1xf32, #tpu.memory_space<smem>>
    memref.store %373, %arg24[%c0_166, %c0_167] : memref<1x1xf32, #tpu.memory_space<smem>>
    return
  }
}

</mosaic_0001>

<llo_original>
// kernel: forward.1
$region0: #{forward.1}
  #allocation0 [shape = 'u32[]', space=smem, size = 0x4, offset = 0x4, fixed_abs, tag = 'smem constant byte address 0x4 - core index']
  #allocation1 [shape = 'u32[72,128]{1,0:T(1,128)}', space=vmem, size = 0x9000, scoped, tag = 'internal scratch']
  %s0 = inlined_call_operand.vmem [shape: s32[16,1], index: 0, kind: input, shape index: {}]
  %s1 = inlined_call_operand.vmem [shape: f32[2,8], index: 1, kind: input, shape index: {}]
  %s2 = inlined_call_operand.vmem [shape: s32[2,1], index: 2, kind: input, shape index: {}]
  %s3 = inlined_call_operand.vmem [shape: f32[128,32], index: 3, kind: input, shape index: {}]
  %s4 = inlined_call_operand.vmem [shape: f32[8,32], index: 4, kind: input, shape index: {}]
  %s5 = inlined_call_operand.vmem [shape: f32[1,32], index: 5, kind: input, shape index: {}]
  %s6 = inlined_call_operand.vmem [shape: f32[1,32], index: 6, kind: input, shape index: {}]
  %s7 = inlined_call_operand.vmem [shape: f32[2,32,96], index: 7, kind: input, shape index: {}]
  %s8 = inlined_call_operand.vmem [shape: f32[2,1,96], index: 8, kind: input, shape index: {}]
  %s9 = inlined_call_operand.vmem [shape: f32[2,32,32], index: 9, kind: input, shape index: {}]
  %s10 = inlined_call_operand.vmem [shape: f32[2,1,32], index: 10, kind: input, shape index: {}]
  %s11 = inlined_call_operand.vmem [shape: f32[2,1,32], index: 11, kind: input, shape index: {}]
  %s12 = inlined_call_operand.vmem [shape: f32[2,1,32], index: 12, kind: input, shape index: {}]
  %s13 = inlined_call_operand.vmem [shape: f32[2,32,64], index: 13, kind: input, shape index: {}]
  %s14 = inlined_call_operand.vmem [shape: f32[2,1,64], index: 14, kind: input, shape index: {}]
  %s15 = inlined_call_operand.vmem [shape: f32[2,64,32], index: 15, kind: input, shape index: {}]
  %s16 = inlined_call_operand.vmem [shape: f32[2,1,32], index: 16, kind: input, shape index: {}]
  %s17 = inlined_call_operand.vmem [shape: f32[2,1,32], index: 17, kind: input, shape index: {}]
  %s18 = inlined_call_operand.vmem [shape: f32[2,1,32], index: 18, kind: input, shape index: {}]
  %s19 = inlined_call_operand.vmem [shape: f32[32,32], index: 19, kind: input, shape index: {}]
  %s20 = inlined_call_operand.vmem [shape: f32[1,32], index: 20, kind: input, shape index: {}]
  %s21 = inlined_call_operand.vmem [shape: f32[32,128], index: 21, kind: input, shape index: {}]
  %s22 = inlined_call_operand.vmem [shape: f32[1,128], index: 22, kind: input, shape index: {}]
  %s23 = inlined_call_operand.hbm [shape: f32[2,128], index: 23, kind: output, shape index: {0}]
  %s24 = inlined_call_operand.hbm [shape: f32[1,1], index: 24, kind: output, shape index: {1}]
  %25 = xla_tuple %s23, %s24
  %s26 = sld [smem:[#allocation0]]
  $region110: #{forward.1} parent=0
    _
  %s28 = ssub.s32 1, %s26
  %s29 = scalar_select 0, %s28, %s26
  $region1: #{forward.1} parent=0
    #allocation2 [shape = 'u8[1024]{0}', space=vmem, size = 0x400, scoped, tag = 'output window, operand 0, single buffered']
    #allocation3 [shape = 's32[1]{0}', space=sflag, size = 0x4, scoped, tag = 'scoped memory for forward.1']
    #allocation4 [shape = 's32[1]{0}', space=sflag, size = 0x4, scoped, tag = 'scoped memory for forward.1']
    #allocation5 [shape = 'u8[512]{0}', space=smem, size = 0x200, scoped, tag = 'output window, operand 1, single buffered']
    %30 = vsyncpa [#allocation3], 0
    %31 = vsyncpa [#allocation4], 0
    // Predicated region
    $region2: #{forward.1} parent=1 // pred_check
      _
    $region3: #{forward.1} parent=1 // pred_check_branch
      %33 = sbr.rel (0) target = $region5
    $region4: #{forward.1} parent=1 // pred_region
      _
    $region5: #{forward.1} parent=1 // pred_fallthru
      _
    // Predicated region
    $region6: #{forward.1} parent=1 // pred_check
      _
    $region7: #{forward.1} parent=1 // pred_check_branch
      %35 = sbr.rel (0) target = $region9
    $region8: #{forward.1} parent=1 // pred_region
      _
    $region9: #{forward.1} parent=1 // pred_fallthru
      _
    // Predicated region
    $region10: #{forward.1} parent=1 // pred_check
      _
    $region11: #{forward.1} parent=1 // pred_check_branch
      %37 = sbr.rel (0) target = $region13
    $region12: #{forward.1} parent=1 // pred_region
      _
    $region13: #{forward.1} parent=1 // pred_fallthru
      _
    // Predicated region
    $region14: #{forward.1} parent=1 // pred_check
      _
    $region15: #{forward.1} parent=1 // pred_check_branch
      %39 = sbr.rel (0) target = $region17
    $region16: #{forward.1} parent=1 // pred_region
      _
    $region17: #{forward.1} parent=1 // pred_fallthru
      _
    // Predicated region
    $region18: #{forward.1} parent=1 // pred_check
      _
    $region19: #{forward.1} parent=1 // pred_check_branch
      %41 = sbr.rel (0) target = $region21
    $region20: #{forward.1} parent=1 // pred_region
      _
    $region21: #{forward.1} parent=1 // pred_fallthru
      _
    // Predicated region
    $region22: #{forward.1} parent=1 // pred_check
      _
    $region23: #{forward.1} parent=1 // pred_check_branch
      %43 = sbr.rel (0) target = $region25
    $region24: #{forward.1} parent=1 // pred_region
      _
    $region25: #{forward.1} parent=1 // pred_fallthru
      _
    // Predicated region
    $region26: #{forward.1} parent=1 // pred_check
      _
    $region27: #{forward.1} parent=1 // pred_check_branch
      %45 = sbr.rel (0) target = $region29
    $region28: #{forward.1} parent=1 // pred_region
      _
    $region29: #{forward.1} parent=1 // pred_fallthru
      _
    // Predicated region
    $region30: #{forward.1} parent=1 // pred_check
      _
    $region31: #{forward.1} parent=1 // pred_check_branch
      %47 = sbr.rel (0) target = $region33
    $region32: #{forward.1} parent=1 // pred_region
      _
    $region33: #{forward.1} parent=1 // pred_fallthru
      _
    // Predicated region
    $region34: #{forward.1} parent=1 // pred_check
      _
    $region35: #{forward.1} parent=1 // pred_check_branch
      %49 = sbr.rel (0) target = $region37
    $region36: #{forward.1} parent=1 // pred_region
      _
    $region37: #{forward.1} parent=1 // pred_fallthru
      _
    // Predicated region
    $region38: #{forward.1} parent=1 // pred_check
      _
    $region39: #{forward.1} parent=1 // pred_check_branch
      %51 = sbr.rel (0) target = $region41
    $region40: #{forward.1} parent=1 // pred_region
      _
    $region41: #{forward.1} parent=1 // pred_fallthru
      _
    // Predicated region
    $region42: #{forward.1} parent=1 // pred_check
      _
    $region43: #{forward.1} parent=1 // pred_check_branch
      %53 = sbr.rel (0) target = $region45
    $region44: #{forward.1} parent=1 // pred_region
      _
    $region45: #{forward.1} parent=1 // pred_fallthru
      _
    // Predicated region
    $region46: #{forward.1} parent=1 // pred_check
      _
    $region47: #{forward.1} parent=1 // pred_check_branch
      %55 = sbr.rel (0) target = $region49
    $region48: #{forward.1} parent=1 // pred_region
      _
    $region49: #{forward.1} parent=1 // pred_fallthru
      _
    // Predicated region
    $region50: #{forward.1} parent=1 // pred_check
      _
    $region51: #{forward.1} parent=1 // pred_check_branch
      %57 = sbr.rel (0) target = $region53
    $region52: #{forward.1} parent=1 // pred_region
      _
    $region53: #{forward.1} parent=1 // pred_fallthru
      _
    // Predicated region
    $region54: #{forward.1} parent=1 // pred_check
      _
    $region55: #{forward.1} parent=1 // pred_check_branch
      %59 = sbr.rel (0) target = $region57
    $region56: #{forward.1} parent=1 // pred_region
      _
    $region57: #{forward.1} parent=1 // pred_fallthru
      _
    // Predicated region
    $region58: #{forward.1} parent=1 // pred_check
      _
    $region59: #{forward.1} parent=1 // pred_check_branch
      %61 = sbr.rel (0) target = $region61
    $region60: #{forward.1} parent=1 // pred_region
      _
    $region61: #{forward.1} parent=1 // pred_fallthru
      _
    // Predicated region
    $region62: #{forward.1} parent=1 // pred_check
      _
    $region63: #{forward.1} parent=1 // pred_check_branch
      %63 = sbr.rel (0) target = $region65
    $region64: #{forward.1} parent=1 // pred_region
      _
    $region65: #{forward.1} parent=1 // pred_fallthru
      _
    // Predicated region
    $region66: #{forward.1} parent=1 // pred_check
      _
    $region67: #{forward.1} parent=1 // pred_check_branch
      %65 = sbr.rel (0) target = $region69
    $region68: #{forward.1} parent=1 // pred_region
      _
    $region69: #{forward.1} parent=1 // pred_fallthru
      _
    // Predicated region
    $region70: #{forward.1} parent=1 // pred_check
      _
    $region71: #{forward.1} parent=1 // pred_check_branch
      %67 = sbr.rel (0) target = $region73
    $region72: #{forward.1} parent=1 // pred_region
      _
    $region73: #{forward.1} parent=1 // pred_fallthru
      _
    // Predicated region
    $region74: #{forward.1} parent=1 // pred_check
      _
    $region75: #{forward.1} parent=1 // pred_check_branch
      %69 = sbr.rel (0) target = $region77
    $region76: #{forward.1} parent=1 // pred_region
      _
    $region77: #{forward.1} parent=1 // pred_fallthru
      _
    // Predicated region
    $region78: #{forward.1} parent=1 // pred_check
      _
    $region79: #{forward.1} parent=1 // pred_check_branch
      %71 = sbr.rel (0) target = $region81
    $region80: #{forward.1} parent=1 // pred_region
      _
    $region81: #{forward.1} parent=1 // pred_fallthru
      _
    // Predicated region
    $region82: #{forward.1} parent=1 // pred_check
      _
    $region83: #{forward.1} parent=1 // pred_check_branch
      %73 = sbr.rel (0) target = $region85
    $region84: #{forward.1} parent=1 // pred_region
      _
    $region85: #{forward.1} parent=1 // pred_fallthru
      _
    // Predicated region
    $region86: #{forward.1} parent=1 // pred_check
      _
    $region87: #{forward.1} parent=1 // pred_check_branch
      %75 = sbr.rel (0) target = $region89
    $region88: #{forward.1} parent=1 // pred_region
      _
    $region89: #{forward.1} parent=1 // pred_fallthru
      _
    // Predicated region
    $region90: #{forward.1} parent=1 // pred_check
      _
    $region91: #{forward.1} parent=1 // pred_check_branch
      %77 = sbr.rel (0) target = $region93
    $region92: #{forward.1} parent=1 // pred_region
      _
    $region93: #{forward.1} parent=1 // pred_fallthru
      _
    %v78 = vld [vmem:[%s0] sm:$0xff]
    %v79 = vld [vmem:[%s0 + $0x8] sm:$0xff]
    %v80 = vlaneseq
    %v81 = vand.u32 %v80, 127
    %82 = vset.pattern.permute.xlu0 0
    %83 = vperm.xlu0 %82, %v78
    %v84 = vpop.permute.xlu0 %83
    %85 = vset.pattern.permute.xlu0 0
    %86 = vperm.xlu0 %85, %v79
    %v87 = vpop.permute.xlu0 %86
    %vm88 = vcmp.eq.s32.totalorder %v81, %v84
    %vm89 = vcmp.eq.s32.totalorder %v81, %v87
    %v90 = vsel %vm88, 1, 0
    %v91 = vsel %vm89, 1, 0
    %v92 = vcvt.s32.f32 %v90
    %v93 = vcvt.s32.f32 %v91
    %v94 = vld [vmem:[%s3] sm:$0xff]
    %v95 = vld [vmem:[%s3 + $0x8] sm:$0xff]
    %v96 = vld [vmem:[%s3 + $0x10] sm:$0xff]
    %v97 = vld [vmem:[%s3 + $0x18] sm:$0xff]
    %v98 = vld [vmem:[%s3 + $0x20] sm:$0xff]
    %v99 = vld [vmem:[%s3 + $0x28] sm:$0xff]
    %v100 = vld [vmem:[%s3 + $0x30] sm:$0xff]
    %v101 = vld [vmem:[%s3 + $0x38] sm:$0xff]
    %v102 = vld [vmem:[%s3 + $0x40] sm:$0xff]
    %v103 = vld [vmem:[%s3 + $0x48] sm:$0xff]
    %v104 = vld [vmem:[%s3 + $0x50] sm:$0xff]
    %v105 = vld [vmem:[%s3 + $0x58] sm:$0xff]
    %v106 = vld [vmem:[%s3 + $0x60] sm:$0xff]
    %v107 = vld [vmem:[%s3 + $0x68] sm:$0xff]
    %v108 = vld [vmem:[%s3 + $0x70] sm:$0xff]
    %v109 = vld [vmem:[%s3 + $0x78] sm:$0xff]
    %110 = vmatpush.msra.mxu0 %v109
    %111 = vmatpush.msra.mxu0 %v108
    %112 = vmatpush.msra.mxu0 %v107
    %113 = vmatpush.msra.mxu0 %v106
    %114 = vmatpush.msra.mxu0 %v105
    %115 = vmatpush.msra.mxu0 %v104
    %116 = vmatpush.msra.mxu0 %v103
    %117 = vmatpush.msra.mxu0 %v102
    %118 = vmatpush.msra.mxu0 %v101
    %119 = vmatpush.msra.mxu0 %v100
    %120 = vmatpush.msra.mxu0 %v99
    %121 = vmatpush.msra.mxu0 %v98
    %122 = vmatpush.msra.mxu0 %v97
    %123 = vmatpush.msra.mxu0 %v96
    %124 = vmatpush.msra.mxu0 %v95
    %125 = vmatpush.msra.mxu0 %v94
    %126 = vmatmul.f32.gmra.mxu0 %v92
    %v127 = vpop.f32.mrf.mxu0
    %v128 = vadd.f32 0.0, %v127
    %129 = vmatmul.f32.gmra.mxu0 %v93
    %v130 = vpop.f32.mrf.mxu0
    %v131 = vadd.f32 0.0, %v130
    %132 = vdwg.mxu0
    %v133 = vld [vmem:[%s4] sm:$0xff]
    %v134 = vadd.f32 %v128, %v133
    %v135 = vadd.f32 %v131, %v133
    %v136 = vld [vmem:[%s5] sm:$0x1]
    %v137 = vld [vmem:[%s6] sm:$0x1]
    %vm138 = vcmask 261120
    %v139 = vsel %vm138, %v134, 0.0
    %140 = vadd.xlane.f32.xlu0 %v139
    %v141 = vpop.xlane.xlu0 %140
    %v142 = vsel %vm138, %v135, 0.0
    %143 = vadd.xlane.f32.xlu0 %v142
    %v144 = vpop.xlane.xlu0 %143
    %v145 = vrcp.pop 32.0
    %v146 = vmul.f32 32.0, %v145
    %v147 = vsub.f32 1.0, %v146
    %v148 = vmul.f32 %v145, %v147
    %v149 = vadd.f32 %v145, %v148
    %vm150 = vweird.f32 %v145
    %v151 = vsel %vm150, %v145, %v149
    %v152 = vmul.f32 %v141, %v151
    %v153 = vmul.f32 %v144, %v151
    %v154 = vsub.f32 %v134, %v152
    %v155 = vsub.f32 %v135, %v153
    %v156 = vmul.f32 %v154, %v154
    %v157 = vmul.f32 %v155, %v155
    %v158 = vsel %vm138, %v156, 0.0
    %159 = vadd.xlane.f32.xlu0 %v158
    %v160 = vpop.xlane.xlu0 %159
    %v161 = vsel %vm138, %v157, 0.0
    %162 = vadd.xlane.f32.xlu0 %v161
    %v163 = vpop.xlane.xlu0 %162
    %v164 = vmul.f32 %v160, %v151
    %v165 = vmul.f32 %v163, %v151
    %v166 = vadd.f32 %v164, 1e-12
    %v167 = vadd.f32 %v165, 1e-12
    %v168 = vrsqrt.pop %v166
    %v169 = vmul.f32 %v168, %v166
    %v170 = vmul.f32 %v169, %v168
    %v171 = vmul.f32 0.5, %v170
    %v172 = vsub.f32 1.5, %v171
    %v173 = vmul.f32 %v168, %v172
    %vm174 = vweird.f32 %v166
    %vm175 = vweird.f32 %v168
    %vm176 = vmor %vm174, %vm175
    %v177 = vsel %vm176, %v168, %v173
    %v178 = vrsqrt.pop %v167
    %v179 = vmul.f32 %v178, %v167
    %v180 = vmul.f32 %v179, %v178
    %v181 = vmul.f32 0.5, %v180
    %v182 = vsub.f32 1.5, %v181
    %v183 = vmul.f32 %v178, %v182
    %vm184 = vweird.f32 %v167
    %vm185 = vweird.f32 %v178
    %vm186 = vmor %vm184, %vm185
    %v187 = vsel %vm186, %v178, %v183
    %v188 = vmul.f32 %v154, %v177
    %v189 = vmul.f32 %v155, %v187
    %v191 = vperm.slane %v136, 0
    %v193 = vmul.f32 %v188, %v191
    %v194 = vmul.f32 %v189, %v191
    %v196 = vperm.slane %v137, 0
    %v198 = vadd.f32 %v193, %v196
    %v199 = vadd.f32 %v194, %v196
    %v200 = vld [vmem:[%s1] sm:$0x3]
    %v201 = vsub.f32 %v200, 1.0
    %v202 = vmul.f32 %v201, 1e+09
    %v204 = vrot.slane %v202, 1
    %v205 = vperm.slane %v202, 0
    %v206 = vperm.slane %v204, 0
    %v209 = vld [vmem:[%s7] sm:$0xff]
    %v210 = vld [vmem:[%s7 + $0x8] sm:$0xff]
    %v211 = vld [vmem:[%s7 + $0x10] sm:$0xff]
    %v212 = vld [vmem:[%s7 + $0x18] sm:$0xff]
    %v213 = vld [vmem:[%s8] sm:$0x1]
    %v215 = vperm.slane %v213, 0
    %v218 = vsel %vm138, %v198, 0
    %v221 = vsel %vm138, %v199, 0
    %223 = vmatpush.msra.mxu0 0.0
    %224 = vmatpush.msra.mxu0 0.0
    %225 = vmatpush.msra.mxu0 0.0
    %226 = vmatpush.msra.mxu0 0.0
    %227 = vmatpush.msra.mxu0 0.0
    %228 = vmatpush.msra.mxu0 0.0
    %229 = vmatpush.msra.mxu0 0.0
    %230 = vmatpush.msra.mxu0 0.0
    %231 = vmatpush.msra.mxu0 0.0
    %232 = vmatpush.msra.mxu0 0.0
    %233 = vmatpush.msra.mxu0 0.0
    %234 = vmatpush.msra.mxu0 0.0
    %235 = vmatpush.msra.mxu0 %v212
    %236 = vmatpush.msra.mxu0 %v211
    %237 = vmatpush.msra.mxu0 %v210
    %238 = vmatpush.msra.mxu0 %v209
    %239 = vmatmul.f32.gmra.mxu0 %v218
    %v240 = vpop.f32.mrf.mxu0
    %v241 = vadd.f32 %v215, %v240
    %242 = vmatmul.f32.gmra.mxu0 %v221
    %v243 = vpop.f32.mrf.mxu0
    %v244 = vadd.f32 %v215, %v243
    %245 = vdwg.mxu0
    %v246 = vld [vmem:[%s9] sm:$0xff]
    %v247 = vld [vmem:[%s9 + $0x8] sm:$0xff]
    %v248 = vld [vmem:[%s9 + $0x10] sm:$0xff]
    %v249 = vld [vmem:[%s9 + $0x18] sm:$0xff]
    %v250 = vld [vmem:[%s10] sm:$0x1]
    %252 = vrot.lane.b32.xlu0 %v241, 96
    %v253 = vpop.permute.xlu0 %252
    %vm254 = vcmask 130048
    %v255 = vsel %vm254, %v241, 0
    %v257 = vsel %vm254, %v253, 0
    %259 = vmatpush.xpose.msra.mxu0 0.0
    %260 = vmatpush.xpose.msra.mxu0 0.0
    %261 = vmatpush.xpose.msra.mxu0 0.0
    %262 = vmatpush.xpose.msra.mxu0 0.0
    %263 = vmatpush.xpose.msra.mxu0 0.0
    %264 = vmatpush.xpose.msra.mxu0 0.0
    %265 = vmatpush.xpose.msra.mxu0 0.0
    %266 = vmatpush.xpose.msra.mxu0 0.0
    %267 = vmatpush.xpose.msra.mxu0 0.0
    %268 = vmatpush.xpose.msra.mxu0 0.0
    %269 = vmatpush.xpose.msra.mxu0 0.0
    %270 = vmatpush.xpose.msra.mxu0 0.0
    %271 = vmatpush.xpose.msra.mxu0 0.0
    %272 = vmatpush.xpose.msra.mxu0 0.0
    %273 = vmatpush.xpose.msra.mxu0 0.0
    %274 = vmatpush.xpose.msra.mxu0 %v257
    %275 = vmatmul.f32.gmra.mxu0 %v255
    %v276 = vpop.f32.mrf.mxu0
    %v277 = vadd.f32 0.0, %v276
    %278 = vdwg.mxu0
    %280 = vrot.lane.b32.xlu0 %v244, 96
    %v281 = vpop.permute.xlu0 %280
    %v282 = vsel %vm254, %v244, 0
    %v284 = vsel %vm254, %v281, 0
    %286 = vmatpush.xpose.msra.mxu0 0.0
    %287 = vmatpush.xpose.msra.mxu0 0.0
    %288 = vmatpush.xpose.msra.mxu0 0.0
    %289 = vmatpush.xpose.msra.mxu0 0.0
    %290 = vmatpush.xpose.msra.mxu0 0.0
    %291 = vmatpush.xpose.msra.mxu0 0.0
    %292 = vmatpush.xpose.msra.mxu0 0.0
    %293 = vmatpush.xpose.msra.mxu0 0.0
    %294 = vmatpush.xpose.msra.mxu0 0.0
    %295 = vmatpush.xpose.msra.mxu0 0.0
    %296 = vmatpush.xpose.msra.mxu0 0.0
    %297 = vmatpush.xpose.msra.mxu0 0.0
    %298 = vmatpush.xpose.msra.mxu0 0.0
    %299 = vmatpush.xpose.msra.mxu0 0.0
    %300 = vmatpush.xpose.msra.mxu0 0.0
    %301 = vmatpush.xpose.msra.mxu0 %v284
    %302 = vmatmul.f32.gmra.mxu0 %v282
    %v303 = vpop.f32.mrf.mxu0
    %v304 = vadd.f32 0.0, %v303
    %305 = vdwg.mxu0
    %v306 = vmul.f32 %v277, 0.25
    %v307 = vmul.f32 %v304, 0.25
    %v308 = vadd.f32 %v306, %v205
    %v309 = vadd.f32 %v307, %v206
    %vm310 = vcmask 64512
    %v311 = vsel %vm310, %v308, -inf
    %312 = vmax.xlane.f32.xlu0 %v311
    %v313 = vpop.xlane.xlu0 %312
    %v314 = vsel %vm310, %v309, -inf
    %315 = vmax.xlane.f32.xlu0 %v314
    %v316 = vpop.xlane.xlu0 %315
    %v317 = vsub.f32 %v308, %v313
    %v318 = vsub.f32 %v309, %v316
    %v319 = vmul.f32 %v317, 1.442695
    %v320 = vpow.pop %v319
    %v321 = vmul.f32 %v318, 1.442695
    %v322 = vpow.pop %v321
    %v323 = vsel %vm310, %v320, 0.0
    %324 = vadd.xlane.f32.xlu0 %v323
    %v325 = vpop.xlane.xlu0 %324
    %v326 = vsel %vm310, %v322, 0.0
    %327 = vadd.xlane.f32.xlu0 %v326
    %v328 = vpop.xlane.xlu0 %327
    %v329 = vrcp.pop %v325
    %v330 = vrcp.pop %v328
    %v331 = vmul.f32 %v320, %v329
    %v332 = vmul.f32 %v322, %v330
    %333 = vrot.lane.b32.xlu0 %v241, 64
    %v334 = vpop.permute.xlu0 %333
    %v337 = vsel %vm310, %v331, 0
    %339 = vmatpush.msra.mxu0 0.0
    %340 = vmatpush.msra.mxu0 0.0
    %341 = vmatpush.msra.mxu0 0.0
    %342 = vmatpush.msra.mxu0 0.0
    %343 = vmatpush.msra.mxu0 0.0
    %344 = vmatpush.msra.mxu0 0.0
    %345 = vmatpush.msra.mxu0 0.0
    %346 = vmatpush.msra.mxu0 0.0
    %347 = vmatpush.msra.mxu0 0.0
    %348 = vmatpush.msra.mxu0 0.0
    %349 = vmatpush.msra.mxu0 0.0
    %350 = vmatpush.msra.mxu0 0.0
    %351 = vmatpush.msra.mxu0 0.0
    %352 = vmatpush.msra.mxu0 0.0
    %353 = vmatpush.msra.mxu0 0.0
    %354 = vmatpush.msra.mxu0 %v334
    %355 = vmatmul.f32.gmra.mxu0 %v337
    %v356 = vpop.f32.mrf.mxu0
    %v357 = vadd.f32 0.0, %v356
    %358 = vdwg.mxu0
    %359 = vrot.lane.b32.xlu0 %v244, 64
    %v360 = vpop.permute.xlu0 %359
    %v363 = vsel %vm310, %v332, 0
    %365 = vmatpush.msra.mxu0 0.0
    %366 = vmatpush.msra.mxu0 0.0
    %367 = vmatpush.msra.mxu0 0.0
    %368 = vmatpush.msra.mxu0 0.0
    %369 = vmatpush.msra.mxu0 0.0
    %370 = vmatpush.msra.mxu0 0.0
    %371 = vmatpush.msra.mxu0 0.0
    %372 = vmatpush.msra.mxu0 0.0
    %373 = vmatpush.msra.mxu0 0.0
    %374 = vmatpush.msra.mxu0 0.0
    %375 = vmatpush.msra.mxu0 0.0
    %376 = vmatpush.msra.mxu0 0.0
    %377 = vmatpush.msra.mxu0 0.0
    %378 = vmatpush.msra.mxu0 0.0
    %379 = vmatpush.msra.mxu0 0.0
    %380 = vmatpush.msra.mxu0 %v360
    %381 = vmatmul.f32.gmra.mxu0 %v363
    %v382 = vpop.f32.mrf.mxu0
    %v383 = vadd.f32 0.0, %v382
    %384 = vdwg.mxu0
    %v386 = vsel %vm254, %v357, 0
    %v389 = vsel %vm254, %v383, 0
    %391 = vmatpush.msra.mxu0 0.0
    %392 = vmatpush.msra.mxu0 0.0
    %393 = vmatpush.msra.mxu0 0.0
    %394 = vmatpush.msra.mxu0 0.0
    %395 = vmatpush.msra.mxu0 0.0
    %396 = vmatpush.msra.mxu0 0.0
    %397 = vmatpush.msra.mxu0 0.0
    %398 = vmatpush.msra.mxu0 0.0
    %399 = vmatpush.msra.mxu0 0.0
    %400 = vmatpush.msra.mxu0 0.0
    %401 = vmatpush.msra.mxu0 0.0
    %402 = vmatpush.msra.mxu0 0.0
    %403 = vmatpush.msra.mxu0 0.0
    %404 = vmatpush.msra.mxu0 0.0
    %405 = vmatpush.msra.mxu0 %v247
    %406 = vmatpush.msra.mxu0 %v246
    %407 = vmatmul.f32.gmra.mxu0 %v386
    %v408 = vpop.f32.mrf.mxu0
    %v409 = vadd.f32 0.0, %v408
    %410 = vmatmul.f32.gmra.mxu0 %v389
    %v411 = vpop.f32.mrf.mxu0
    %v412 = vadd.f32 0.0, %v411
    %413 = vdwg.mxu0
    %v415 = vperm.slane %v250, 0
    %v417 = vadd.f32 %v415, %v409
    %v418 = vadd.f32 %v415, %v412
    %419 = vrot.lane.b32.xlu0 %v241, 112
    %v420 = vpop.permute.xlu0 %419
    %421 = vrot.lane.b32.xlu0 %v241, 80
    %v422 = vpop.permute.xlu0 %421
    %v423 = vsel %vm254, %v420, 0
    %v425 = vsel %vm254, %v422, 0
    %427 = vmatpush.xpose.msra.mxu0 0.0
    %428 = vmatpush.xpose.msra.mxu0 0.0
    %429 = vmatpush.xpose.msra.mxu0 0.0
    %430 = vmatpush.xpose.msra.mxu0 0.0
    %431 = vmatpush.xpose.msra.mxu0 0.0
    %432 = vmatpush.xpose.msra.mxu0 0.0
    %433 = vmatpush.xpose.msra.mxu0 0.0
    %434 = vmatpush.xpose.msra.mxu0 0.0
    %435 = vmatpush.xpose.msra.mxu0 0.0
    %436 = vmatpush.xpose.msra.mxu0 0.0
    %437 = vmatpush.xpose.msra.mxu0 0.0
    %438 = vmatpush.xpose.msra.mxu0 0.0
    %439 = vmatpush.xpose.msra.mxu0 0.0
    %440 = vmatpush.xpose.msra.mxu0 0.0
    %441 = vmatpush.xpose.msra.mxu0 0.0
    %442 = vmatpush.xpose.msra.mxu0 %v425
    %443 = vmatmul.f32.gmra.mxu0 %v423
    %v444 = vpop.f32.mrf.mxu0
    %v445 = vadd.f32 0.0, %v444
    %446 = vdwg.mxu0
    %447 = vrot.lane.b32.xlu0 %v244, 112
    %v448 = vpop.permute.xlu0 %447
    %449 = vrot.lane.b32.xlu0 %v244, 80
    %v450 = vpop.permute.xlu0 %449
    %v451 = vsel %vm254, %v448, 0
    %v453 = vsel %vm254, %v450, 0
    %455 = vmatpush.xpose.msra.mxu0 0.0
    %456 = vmatpush.xpose.msra.mxu0 0.0
    %457 = vmatpush.xpose.msra.mxu0 0.0
    %458 = vmatpush.xpose.msra.mxu0 0.0
    %459 = vmatpush.xpose.msra.mxu0 0.0
    %460 = vmatpush.xpose.msra.mxu0 0.0
    %461 = vmatpush.xpose.msra.mxu0 0.0
    %462 = vmatpush.xpose.msra.mxu0 0.0
    %463 = vmatpush.xpose.msra.mxu0 0.0
    %464 = vmatpush.xpose.msra.mxu0 0.0
    %465 = vmatpush.xpose.msra.mxu0 0.0
    %466 = vmatpush.xpose.msra.mxu0 0.0
    %467 = vmatpush.xpose.msra.mxu0 0.0
    %468 = vmatpush.xpose.msra.mxu0 0.0
    %469 = vmatpush.xpose.msra.mxu0 0.0
    %470 = vmatpush.xpose.msra.mxu0 %v453
    %471 = vmatmul.f32.gmra.mxu0 %v451
    %v472 = vpop.f32.mrf.mxu0
    %v473 = vadd.f32 0.0, %v472
    %474 = vdwg.mxu0
    %v475 = vmul.f32 %v445, 0.25
    %v476 = vmul.f32 %v473, 0.25
    %v477 = vadd.f32 %v475, %v205
    %v478 = vadd.f32 %v476, %v206
    %v479 = vsel %vm310, %v477, -inf
    %480 = vmax.xlane.f32.xlu0 %v479
    %v481 = vpop.xlane.xlu0 %480
    %v482 = vsel %vm310, %v478, -inf
    %483 = vmax.xlane.f32.xlu0 %v482
    %v484 = vpop.xlane.xlu0 %483
    %v485 = vsub.f32 %v477, %v481
    %v486 = vsub.f32 %v478, %v484
    %v487 = vmul.f32 %v485, 1.442695
    %v488 = vpow.pop %v487
    %v489 = vmul.f32 %v486, 1.442695
    %v490 = vpow.pop %v489
    %v491 = vsel %vm310, %v488, 0.0
    %492 = vadd.xlane.f32.xlu0 %v491
    %v493 = vpop.xlane.xlu0 %492
    %v494 = vsel %vm310, %v490, 0.0
    %495 = vadd.xlane.f32.xlu0 %v494
    %v496 = vpop.xlane.xlu0 %495
    %v497 = vrcp.pop %v493
    %v498 = vrcp.pop %v496
    %v499 = vmul.f32 %v488, %v497
    %v500 = vmul.f32 %v490, %v498
    %501 = vrot.lane.b32.xlu0 %v241, 48
    %v502 = vpop.permute.xlu0 %501
    %v505 = vsel %vm310, %v499, 0
    %507 = vmatpush.msra.mxu0 0.0
    %508 = vmatpush.msra.mxu0 0.0
    %509 = vmatpush.msra.mxu0 0.0
    %510 = vmatpush.msra.mxu0 0.0
    %511 = vmatpush.msra.mxu0 0.0
    %512 = vmatpush.msra.mxu0 0.0
    %513 = vmatpush.msra.mxu0 0.0
    %514 = vmatpush.msra.mxu0 0.0
    %515 = vmatpush.msra.mxu0 0.0
    %516 = vmatpush.msra.mxu0 0.0
    %517 = vmatpush.msra.mxu0 0.0
    %518 = vmatpush.msra.mxu0 0.0
    %519 = vmatpush.msra.mxu0 0.0
    %520 = vmatpush.msra.mxu0 0.0
    %521 = vmatpush.msra.mxu0 0.0
    %522 = vmatpush.msra.mxu0 %v502
    %523 = vmatmul.f32.gmra.mxu0 %v505
    %v524 = vpop.f32.mrf.mxu0
    %v525 = vadd.f32 0.0, %v524
    %526 = vdwg.mxu0
    %527 = vrot.lane.b32.xlu0 %v244, 48
    %v528 = vpop.permute.xlu0 %527
    %v531 = vsel %vm310, %v500, 0
    %533 = vmatpush.msra.mxu0 0.0
    %534 = vmatpush.msra.mxu0 0.0
    %535 = vmatpush.msra.mxu0 0.0
    %536 = vmatpush.msra.mxu0 0.0
    %537 = vmatpush.msra.mxu0 0.0
    %538 = vmatpush.msra.mxu0 0.0
    %539 = vmatpush.msra.mxu0 0.0
    %540 = vmatpush.msra.mxu0 0.0
    %541 = vmatpush.msra.mxu0 0.0
    %542 = vmatpush.msra.mxu0 0.0
    %543 = vmatpush.msra.mxu0 0.0
    %544 = vmatpush.msra.mxu0 0.0
    %545 = vmatpush.msra.mxu0 0.0
    %546 = vmatpush.msra.mxu0 0.0
    %547 = vmatpush.msra.mxu0 0.0
    %548 = vmatpush.msra.mxu0 %v528
    %549 = vmatmul.f32.gmra.mxu0 %v531
    %v550 = vpop.f32.mrf.mxu0
    %v551 = vadd.f32 0.0, %v550
    %552 = vdwg.mxu0
    %v554 = vsel %vm254, %v525, 0
    %v557 = vsel %vm254, %v551, 0
    %559 = vmatpush.msra.mxu0 0.0
    %560 = vmatpush.msra.mxu0 0.0
    %561 = vmatpush.msra.mxu0 0.0
    %562 = vmatpush.msra.mxu0 0.0
    %563 = vmatpush.msra.mxu0 0.0
    %564 = vmatpush.msra.mxu0 0.0
    %565 = vmatpush.msra.mxu0 0.0
    %566 = vmatpush.msra.mxu0 0.0
    %567 = vmatpush.msra.mxu0 0.0
    %568 = vmatpush.msra.mxu0 0.0
    %569 = vmatpush.msra.mxu0 0.0
    %570 = vmatpush.msra.mxu0 0.0
    %571 = vmatpush.msra.mxu0 0.0
    %572 = vmatpush.msra.mxu0 0.0
    %573 = vmatpush.msra.mxu0 %v249
    %574 = vmatpush.msra.mxu0 %v248
    %575 = vmatmul.f32.gmra.mxu0 %v554
    %v576 = vpop.f32.mrf.mxu0
    %v577 = vadd.f32 0.0, %v576
    %578 = vmatmul.f32.gmra.mxu0 %v557
    %v579 = vpop.f32.mrf.mxu0
    %v580 = vadd.f32 0.0, %v579
    %581 = vdwg.mxu0
    %v582 = vadd.f32 %v417, %v577
    %v583 = vadd.f32 %v418, %v580
    %v584 = vadd.f32 %v198, %v582
    %v585 = vadd.f32 %v199, %v583
    %v586 = vld [vmem:[%s11] sm:$0x1]
    %v587 = vld [vmem:[%s12] sm:$0x1]
    %v588 = vsel %vm138, %v584, 0.0
    %589 = vadd.xlane.f32.xlu0 %v588
    %v590 = vpop.xlane.xlu0 %589
    %v591 = vsel %vm138, %v585, 0.0
    %592 = vadd.xlane.f32.xlu0 %v591
    %v593 = vpop.xlane.xlu0 %592
    %v594 = vmul.f32 %v590, %v151
    %v595 = vmul.f32 %v593, %v151
    %v596 = vsub.f32 %v584, %v594
    %v597 = vsub.f32 %v585, %v595
    %v598 = vmul.f32 %v596, %v596
    %v599 = vmul.f32 %v597, %v597
    %v600 = vsel %vm138, %v598, 0.0
    %601 = vadd.xlane.f32.xlu0 %v600
    %v602 = vpop.xlane.xlu0 %601
    %v603 = vsel %vm138, %v599, 0.0
    %604 = vadd.xlane.f32.xlu0 %v603
    %v605 = vpop.xlane.xlu0 %604
    %v606 = vmul.f32 %v602, %v151
    %v607 = vmul.f32 %v605, %v151
    %v608 = vadd.f32 %v606, 1e-12
    %v609 = vadd.f32 %v607, 1e-12
    %v610 = vrsqrt.pop %v608
    %v611 = vmul.f32 %v610, %v608
    %v612 = vmul.f32 %v611, %v610
    %v613 = vmul.f32 0.5, %v612
    %v614 = vsub.f32 1.5, %v613
    %v615 = vmul.f32 %v610, %v614
    %vm616 = vweird.f32 %v608
    %vm617 = vweird.f32 %v610
    %vm618 = vmor %vm616, %vm617
    %v619 = vsel %vm618, %v610, %v615
    %v620 = vrsqrt.pop %v609
    %v621 = vmul.f32 %v620, %v609
    %v622 = vmul.f32 %v621, %v620
    %v623 = vmul.f32 0.5, %v622
    %v624 = vsub.f32 1.5, %v623
    %v625 = vmul.f32 %v620, %v624
    %vm626 = vweird.f32 %v609
    %vm627 = vweird.f32 %v620
    %vm628 = vmor %vm626, %vm627
    %v629 = vsel %vm628, %v620, %v625
    %v630 = vmul.f32 %v596, %v619
    %v631 = vmul.f32 %v597, %v629
    %v633 = vperm.slane %v586, 0
    %v635 = vmul.f32 %v630, %v633
    %v636 = vmul.f32 %v631, %v633
    %v638 = vperm.slane %v587, 0
    %v640 = vadd.f32 %v635, %v638
    %v641 = vadd.f32 %v636, %v638
    %v642 = vld [vmem:[%s13] sm:$0xff]
    %v643 = vld [vmem:[%s13 + $0x8] sm:$0xff]
    %v644 = vld [vmem:[%s13 + $0x10] sm:$0xff]
    %v645 = vld [vmem:[%s13 + $0x18] sm:$0xff]
    %v646 = vld [vmem:[%s14] sm:$0x1]
    %v648 = vperm.slane %v646, 0
    %v651 = vsel %vm138, %v640, 0
    %v654 = vsel %vm138, %v641, 0
    %656 = vmatpush.msra.mxu0 0.0
    %657 = vmatpush.msra.mxu0 0.0
    %658 = vmatpush.msra.mxu0 0.0
    %659 = vmatpush.msra.mxu0 0.0
    %660 = vmatpush.msra.mxu0 0.0
    %661 = vmatpush.msra.mxu0 0.0
    %662 = vmatpush.msra.mxu0 0.0
    %663 = vmatpush.msra.mxu0 0.0
    %664 = vmatpush.msra.mxu0 0.0
    %665 = vmatpush.msra.mxu0 0.0
    %666 = vmatpush.msra.mxu0 0.0
    %667 = vmatpush.msra.mxu0 0.0
    %668 = vmatpush.msra.mxu0 %v645
    %669 = vmatpush.msra.mxu0 %v644
    %670 = vmatpush.msra.mxu0 %v643
    %671 = vmatpush.msra.mxu0 %v642
    %672 = vmatmul.f32.gmra.mxu0 %v651
    %v673 = vpop.f32.mrf.mxu0
    %v674 = vadd.f32 %v648, %v673
    %675 = vmatmul.f32.gmra.mxu0 %v654
    %v676 = vpop.f32.mrf.mxu0
    %v677 = vadd.f32 %v648, %v676
    %678 = vdwg.mxu0
    %v679 = vmul.f32 %v674, %v674
    %v680 = vmul.f32 %v677, %v677
    %v681 = vmul.f32 %v674, %v679
    %v682 = vmul.f32 %v677, %v680
    %v683 = vmul.f32 %v681, 0.044715
    %v684 = vmul.f32 %v682, 0.044715
    %v685 = vadd.f32 %v674, %v683
    %v686 = vadd.f32 %v677, %v684
    %v687 = vmul.f32 %v685, 0.7978846
    %v688 = vmul.f32 %v686, 0.7978846
    %v689 = vtanh.pop %v687
    %v690 = vtanh.pop %v688
    %v691 = vadd.f32 %v689, 1.0
    %v692 = vadd.f32 %v690, 1.0
    %v693 = vmul.f32 %v691, 0.5
    %v694 = vmul.f32 %v692, 0.5
    %v695 = vmul.f32 %v674, %v693
    %v696 = vmul.f32 %v677, %v694
    %v697 = vld [vmem:[%s15] sm:$0xff]
    %v698 = vld [vmem:[%s15 + $0x8] sm:$0xff]
    %v699 = vld [vmem:[%s15 + $0x10] sm:$0xff]
    %v700 = vld [vmem:[%s15 + $0x18] sm:$0xff]
    %v701 = vld [vmem:[%s15 + $0x20] sm:$0xff]
    %v702 = vld [vmem:[%s15 + $0x28] sm:$0xff]
    %v703 = vld [vmem:[%s15 + $0x30] sm:$0xff]
    %v704 = vld [vmem:[%s15 + $0x38] sm:$0xff]
    %v705 = vld [vmem:[%s16] sm:$0x1]
    %v707 = vperm.slane %v705, 0
    %vm709 = vcmask 523264
    %v711 = vsel %vm709, %v695, 0
    %v714 = vsel %vm709, %v696, 0
    %716 = vmatpush.msra.mxu0 0.0
    %717 = vmatpush.msra.mxu0 0.0
    %718 = vmatpush.msra.mxu0 0.0
    %719 = vmatpush.msra.mxu0 0.0
    %720 = vmatpush.msra.mxu0 0.0
    %721 = vmatpush.msra.mxu0 0.0
    %722 = vmatpush.msra.mxu0 0.0
    %723 = vmatpush.msra.mxu0 0.0
    %724 = vmatpush.msra.mxu0 %v704
    %725 = vmatpush.msra.mxu0 %v703
    %726 = vmatpush.msra.mxu0 %v702
    %727 = vmatpush.msra.mxu0 %v701
    %728 = vmatpush.msra.mxu0 %v700
    %729 = vmatpush.msra.mxu0 %v699
    %730 = vmatpush.msra.mxu0 %v698
    %731 = vmatpush.msra.mxu0 %v697
    %732 = vmatmul.f32.gmra.mxu0 %v711
    %v733 = vpop.f32.mrf.mxu0
    %v734 = vadd.f32 %v707, %v733
    %735 = vmatmul.f32.gmra.mxu0 %v714
    %v736 = vpop.f32.mrf.mxu0
    %v737 = vadd.f32 %v707, %v736
    %738 = vdwg.mxu0
    %v739 = vadd.f32 %v640, %v734
    %v740 = vadd.f32 %v641, %v737
    %v741 = vld [vmem:[%s17] sm:$0x1]
    %v742 = vld [vmem:[%s18] sm:$0x1]
    %v743 = vsel %vm138, %v739, 0.0
    %744 = vadd.xlane.f32.xlu0 %v743
    %v745 = vpop.xlane.xlu0 %744
    %v746 = vsel %vm138, %v740, 0.0
    %747 = vadd.xlane.f32.xlu0 %v746
    %v748 = vpop.xlane.xlu0 %747
    %v749 = vmul.f32 %v745, %v151
    %v750 = vmul.f32 %v748, %v151
    %v751 = vsub.f32 %v739, %v749
    %v752 = vsub.f32 %v740, %v750
    %v753 = vmul.f32 %v751, %v751
    %v754 = vmul.f32 %v752, %v752
    %v755 = vsel %vm138, %v753, 0.0
    %756 = vadd.xlane.f32.xlu0 %v755
    %v757 = vpop.xlane.xlu0 %756
    %v758 = vsel %vm138, %v754, 0.0
    %759 = vadd.xlane.f32.xlu0 %v758
    %v760 = vpop.xlane.xlu0 %759
    %v761 = vmul.f32 %v757, %v151
    %v762 = vmul.f32 %v760, %v151
    %v763 = vadd.f32 %v761, 1e-12
    %v764 = vadd.f32 %v762, 1e-12
    %v765 = vrsqrt.pop %v763
    %v766 = vmul.f32 %v765, %v763
    %v767 = vmul.f32 %v766, %v765
    %v768 = vmul.f32 0.5, %v767
    %v769 = vsub.f32 1.5, %v768
    %v770 = vmul.f32 %v765, %v769
    %vm771 = vweird.f32 %v763
    %vm772 = vweird.f32 %v765
    %vm773 = vmor %vm771, %vm772
    %v774 = vsel %vm773, %v765, %v770
    %v775 = vrsqrt.pop %v764
    %v776 = vmul.f32 %v775, %v764
    %v777 = vmul.f32 %v776, %v775
    %v778 = vmul.f32 0.5, %v777
    %v779 = vsub.f32 1.5, %v778
    %v780 = vmul.f32 %v775, %v779
    %vm781 = vweird.f32 %v764
    %vm782 = vweird.f32 %v775
    %vm783 = vmor %vm781, %vm782
    %v784 = vsel %vm783, %v775, %v780
    %v785 = vmul.f32 %v751, %v774
    %v786 = vmul.f32 %v752, %v784
    %v788 = vperm.slane %v741, 0
    %v790 = vmul.f32 %v785, %v788
    %v791 = vmul.f32 %v786, %v788
    %v793 = vperm.slane %v742, 0
    %v795 = vadd.f32 %v790, %v793
    %v796 = vadd.f32 %v791, %v793
    %s797 = scalar_lea.vmem %s7, 32
    %v798 = vld [vmem:[%s797] sm:$0xff]
    %v799 = vld [vmem:[%s797 + $0x8] sm:$0xff]
    %v800 = vld [vmem:[%s797 + $0x10] sm:$0xff]
    %v801 = vld [vmem:[%s797 + $0x18] sm:$0xff]
    %s802 = scalar_lea.vmem %s8, 1
    %v803 = vld [vmem:[%s802] sm:$0x1]
    %v805 = vperm.slane %v803, 0
    %v808 = vsel %vm138, %v795, 0
    %v811 = vsel %vm138, %v796, 0
    %813 = vmatpush.msra.mxu0 0.0
    %814 = vmatpush.msra.mxu0 0.0
    %815 = vmatpush.msra.mxu0 0.0
    %816 = vmatpush.msra.mxu0 0.0
    %817 = vmatpush.msra.mxu0 0.0
    %818 = vmatpush.msra.mxu0 0.0
    %819 = vmatpush.msra.mxu0 0.0
    %820 = vmatpush.msra.mxu0 0.0
    %821 = vmatpush.msra.mxu0 0.0
    %822 = vmatpush.msra.mxu0 0.0
    %823 = vmatpush.msra.mxu0 0.0
    %824 = vmatpush.msra.mxu0 0.0
    %825 = vmatpush.msra.mxu0 %v801
    %826 = vmatpush.msra.mxu0 %v800
    %827 = vmatpush.msra.mxu0 %v799
    %828 = vmatpush.msra.mxu0 %v798
    %829 = vmatmul.f32.gmra.mxu0 %v808
    %v830 = vpop.f32.mrf.mxu0
    %v831 = vadd.f32 %v805, %v830
    %832 = vmatmul.f32.gmra.mxu0 %v811
    %v833 = vpop.f32.mrf.mxu0
    %v834 = vadd.f32 %v805, %v833
    %835 = vdwg.mxu0
    %s836 = scalar_lea.vmem %s9, 32
    %v837 = vld [vmem:[%s836] sm:$0xff]
    %v838 = vld [vmem:[%s836 + $0x8] sm:$0xff]
    %v839 = vld [vmem:[%s836 + $0x10] sm:$0xff]
    %v840 = vld [vmem:[%s836 + $0x18] sm:$0xff]
    %s841 = scalar_lea.vmem %s10, 1
    %v842 = vld [vmem:[%s841] sm:$0x1]
    %844 = vrot.lane.b32.xlu0 %v831, 96
    %v845 = vpop.permute.xlu0 %844
    %v846 = vsel %vm254, %v831, 0
    %v848 = vsel %vm254, %v845, 0
    %850 = vmatpush.xpose.msra.mxu0 0.0
    %851 = vmatpush.xpose.msra.mxu0 0.0
    %852 = vmatpush.xpose.msra.mxu0 0.0
    %853 = vmatpush.xpose.msra.mxu0 0.0
    %854 = vmatpush.xpose.msra.mxu0 0.0
    %855 = vmatpush.xpose.msra.mxu0 0.0
    %856 = vmatpush.xpose.msra.mxu0 0.0
    %857 = vmatpush.xpose.msra.mxu0 0.0
    %858 = vmatpush.xpose.msra.mxu0 0.0
    %859 = vmatpush.xpose.msra.mxu0 0.0
    %860 = vmatpush.xpose.msra.mxu0 0.0
    %861 = vmatpush.xpose.msra.mxu0 0.0
    %862 = vmatpush.xpose.msra.mxu0 0.0
    %863 = vmatpush.xpose.msra.mxu0 0.0
    %864 = vmatpush.xpose.msra.mxu0 0.0
    %865 = vmatpush.xpose.msra.mxu0 %v848
    %866 = vmatmul.f32.gmra.mxu0 %v846
    %v867 = vpop.f32.mrf.mxu0
    %v868 = vadd.f32 0.0, %v867
    %869 = vdwg.mxu0
    %871 = vrot.lane.b32.xlu0 %v834, 96
    %v872 = vpop.permute.xlu0 %871
    %v873 = vsel %vm254, %v834, 0
    %v875 = vsel %vm254, %v872, 0
    %877 = vmatpush.xpose.msra.mxu0 0.0
    %878 = vmatpush.xpose.msra.mxu0 0.0
    %879 = vmatpush.xpose.msra.mxu0 0.0
    %880 = vmatpush.xpose.msra.mxu0 0.0
    %881 = vmatpush.xpose.msra.mxu0 0.0
    %882 = vmatpush.xpose.msra.mxu0 0.0
    %883 = vmatpush.xpose.msra.mxu0 0.0
    %884 = vmatpush.xpose.msra.mxu0 0.0
    %885 = vmatpush.xpose.msra.mxu0 0.0
    %886 = vmatpush.xpose.msra.mxu0 0.0
    %887 = vmatpush.xpose.msra.mxu0 0.0
    %888 = vmatpush.xpose.msra.mxu0 0.0
    %889 = vmatpush.xpose.msra.mxu0 0.0
    %890 = vmatpush.xpose.msra.mxu0 0.0
    %891 = vmatpush.xpose.msra.mxu0 0.0
    %892 = vmatpush.xpose.msra.mxu0 %v875
    %893 = vmatmul.f32.gmra.mxu0 %v873
    %v894 = vpop.f32.mrf.mxu0
    %v895 = vadd.f32 0.0, %v894
    %896 = vdwg.mxu0
    %v897 = vmul.f32 %v868, 0.25
    %v898 = vmul.f32 %v895, 0.25
    %v899 = vadd.f32 %v897, %v205
    %v900 = vadd.f32 %v898, %v206
    %v901 = vsel %vm310, %v899, -inf
    %902 = vmax.xlane.f32.xlu0 %v901
    %v903 = vpop.xlane.xlu0 %902
    %v904 = vsel %vm310, %v900, -inf
    %905 = vmax.xlane.f32.xlu0 %v904
    %v906 = vpop.xlane.xlu0 %905
    %v907 = vsub.f32 %v899, %v903
    %v908 = vsub.f32 %v900, %v906
    %v909 = vmul.f32 %v907, 1.442695
    %v910 = vpow.pop %v909
    %v911 = vmul.f32 %v908, 1.442695
    %v912 = vpow.pop %v911
    %v913 = vsel %vm310, %v910, 0.0
    %914 = vadd.xlane.f32.xlu0 %v913
    %v915 = vpop.xlane.xlu0 %914
    %v916 = vsel %vm310, %v912, 0.0
    %917 = vadd.xlane.f32.xlu0 %v916
    %v918 = vpop.xlane.xlu0 %917
    %v919 = vrcp.pop %v915
    %v920 = vrcp.pop %v918
    %v921 = vmul.f32 %v910, %v919
    %v922 = vmul.f32 %v912, %v920
    %923 = vrot.lane.b32.xlu0 %v831, 64
    %v924 = vpop.permute.xlu0 %923
    %v927 = vsel %vm310, %v921, 0
    %929 = vmatpush.msra.mxu0 0.0
    %930 = vmatpush.msra.mxu0 0.0
    %931 = vmatpush.msra.mxu0 0.0
    %932 = vmatpush.msra.mxu0 0.0
    %933 = vmatpush.msra.mxu0 0.0
    %934 = vmatpush.msra.mxu0 0.0
    %935 = vmatpush.msra.mxu0 0.0
    %936 = vmatpush.msra.mxu0 0.0
    %937 = vmatpush.msra.mxu0 0.0
    %938 = vmatpush.msra.mxu0 0.0
    %939 = vmatpush.msra.mxu0 0.0
    %940 = vmatpush.msra.mxu0 0.0
    %941 = vmatpush.msra.mxu0 0.0
    %942 = vmatpush.msra.mxu0 0.0
    %943 = vmatpush.msra.mxu0 0.0
    %944 = vmatpush.msra.mxu0 %v924
    %945 = vmatmul.f32.gmra.mxu0 %v927
    %v946 = vpop.f32.mrf.mxu0
    %v947 = vadd.f32 0.0, %v946
    %948 = vdwg.mxu0
    %949 = vrot.lane.b32.xlu0 %v834, 64
    %v950 = vpop.permute.xlu0 %949
    %v953 = vsel %vm310, %v922, 0
    %955 = vmatpush.msra.mxu0 0.0
    %956 = vmatpush.msra.mxu0 0.0
    %957 = vmatpush.msra.mxu0 0.0
    %958 = vmatpush.msra.mxu0 0.0
    %959 = vmatpush.msra.mxu0 0.0
    %960 = vmatpush.msra.mxu0 0.0
    %961 = vmatpush.msra.mxu0 0.0
    %962 = vmatpush.msra.mxu0 0.0
    %963 = vmatpush.msra.mxu0 0.0
    %964 = vmatpush.msra.mxu0 0.0
    %965 = vmatpush.msra.mxu0 0.0
    %966 = vmatpush.msra.mxu0 0.0
    %967 = vmatpush.msra.mxu0 0.0
    %968 = vmatpush.msra.mxu0 0.0
    %969 = vmatpush.msra.mxu0 0.0
    %970 = vmatpush.msra.mxu0 %v950
    %971 = vmatmul.f32.gmra.mxu0 %v953
    %v972 = vpop.f32.mrf.mxu0
    %v973 = vadd.f32 0.0, %v972
    %974 = vdwg.mxu0
    %v976 = vsel %vm254, %v947, 0
    %v979 = vsel %vm254, %v973, 0
    %981 = vmatpush.msra.mxu0 0.0
    %982 = vmatpush.msra.mxu0 0.0
    %983 = vmatpush.msra.mxu0 0.0
    %984 = vmatpush.msra.mxu0 0.0
    %985 = vmatpush.msra.mxu0 0.0
    %986 = vmatpush.msra.mxu0 0.0
    %987 = vmatpush.msra.mxu0 0.0
    %988 = vmatpush.msra.mxu0 0.0
    %989 = vmatpush.msra.mxu0 0.0
    %990 = vmatpush.msra.mxu0 0.0
    %991 = vmatpush.msra.mxu0 0.0
    %992 = vmatpush.msra.mxu0 0.0
    %993 = vmatpush.msra.mxu0 0.0
    %994 = vmatpush.msra.mxu0 0.0
    %995 = vmatpush.msra.mxu0 %v838
    %996 = vmatpush.msra.mxu0 %v837
    %997 = vmatmul.f32.gmra.mxu0 %v976
    %v998 = vpop.f32.mrf.mxu0
    %v999 = vadd.f32 0.0, %v998
    %1000 = vmatmul.f32.gmra.mxu0 %v979
    %v1001 = vpop.f32.mrf.mxu0
    %v1002 = vadd.f32 0.0, %v1001
    %1003 = vdwg.mxu0
    %v1005 = vperm.slane %v842, 0
    %v1007 = vadd.f32 %v1005, %v999
    %v1008 = vadd.f32 %v1005, %v1002
    %1009 = vrot.lane.b32.xlu0 %v831, 112
    %v1010 = vpop.permute.xlu0 %1009
    %1011 = vrot.lane.b32.xlu0 %v831, 80
    %v1012 = vpop.permute.xlu0 %1011
    %v1013 = vsel %vm254, %v1010, 0
    %v1015 = vsel %vm254, %v1012, 0
    %1017 = vmatpush.xpose.msra.mxu0 0.0
    %1018 = vmatpush.xpose.msra.mxu0 0.0
    %1019 = vmatpush.xpose.msra.mxu0 0.0
    %1020 = vmatpush.xpose.msra.mxu0 0.0
    %1021 = vmatpush.xpose.msra.mxu0 0.0
    %1022 = vmatpush.xpose.msra.mxu0 0.0
    %1023 = vmatpush.xpose.msra.mxu0 0.0
    %1024 = vmatpush.xpose.msra.mxu0 0.0
    %1025 = vmatpush.xpose.msra.mxu0 0.0
    %1026 = vmatpush.xpose.msra.mxu0 0.0
    %1027 = vmatpush.xpose.msra.mxu0 0.0
    %1028 = vmatpush.xpose.msra.mxu0 0.0
    %1029 = vmatpush.xpose.msra.mxu0 0.0
    %1030 = vmatpush.xpose.msra.mxu0 0.0
    %1031 = vmatpush.xpose.msra.mxu0 0.0
    %1032 = vmatpush.xpose.msra.mxu0 %v1015
    %1033 = vmatmul.f32.gmra.mxu0 %v1013
    %v1034 = vpop.f32.mrf.mxu0
    %v1035 = vadd.f32 0.0, %v1034
    %1036 = vdwg.mxu0
    %1037 = vrot.lane.b32.xlu0 %v834, 112
    %v1038 = vpop.permute.xlu0 %1037
    %1039 = vrot.lane.b32.xlu0 %v834, 80
    %v1040 = vpop.permute.xlu0 %1039
    %v1041 = vsel %vm254, %v1038, 0
    %v1043 = vsel %vm254, %v1040, 0
    %1045 = vmatpush.xpose.msra.mxu0 0.0
    %1046 = vmatpush.xpose.msra.mxu0 0.0
    %1047 = vmatpush.xpose.msra.mxu0 0.0
    %1048 = vmatpush.xpose.msra.mxu0 0.0
    %1049 = vmatpush.xpose.msra.mxu0 0.0
    %1050 = vmatpush.xpose.msra.mxu0 0.0
    %1051 = vmatpush.xpose.msra.mxu0 0.0
    %1052 = vmatpush.xpose.msra.mxu0 0.0
    %1053 = vmatpush.xpose.msra.mxu0 0.0
    %1054 = vmatpush.xpose.msra.mxu0 0.0
    %1055 = vmatpush.xpose.msra.mxu0 0.0
    %1056 = vmatpush.xpose.msra.mxu0 0.0
    %1057 = vmatpush.xpose.msra.mxu0 0.0
    %1058 = vmatpush.xpose.msra.mxu0 0.0
    %1059 = vmatpush.xpose.msra.mxu0 0.0
    %1060 = vmatpush.xpose.msra.mxu0 %v1043
    %1061 = vmatmul.f32.gmra.mxu0 %v1041
    %v1062 = vpop.f32.mrf.mxu0
    %v1063 = vadd.f32 0.0, %v1062
    %1064 = vdwg.mxu0
    %v1065 = vmul.f32 %v1035, 0.25
    %v1066 = vmul.f32 %v1063, 0.25
    %v1067 = vadd.f32 %v1065, %v205
    %v1068 = vadd.f32 %v1066, %v206
    %v1069 = vsel %vm310, %v1067, -inf
    %1070 = vmax.xlane.f32.xlu0 %v1069
    %v1071 = vpop.xlane.xlu0 %1070
    %v1072 = vsel %vm310, %v1068, -inf
    %1073 = vmax.xlane.f32.xlu0 %v1072
    %v1074 = vpop.xlane.xlu0 %1073
    %v1075 = vsub.f32 %v1067, %v1071
    %v1076 = vsub.f32 %v1068, %v1074
    %v1077 = vmul.f32 %v1075, 1.442695
    %v1078 = vpow.pop %v1077
    %v1079 = vmul.f32 %v1076, 1.442695
    %v1080 = vpow.pop %v1079
    %v1081 = vsel %vm310, %v1078, 0.0
    %1082 = vadd.xlane.f32.xlu0 %v1081
    %v1083 = vpop.xlane.xlu0 %1082
    %v1084 = vsel %vm310, %v1080, 0.0
    %1085 = vadd.xlane.f32.xlu0 %v1084
    %v1086 = vpop.xlane.xlu0 %1085
    %v1087 = vrcp.pop %v1083
    %v1088 = vrcp.pop %v1086
    %v1089 = vmul.f32 %v1078, %v1087
    %v1090 = vmul.f32 %v1080, %v1088
    %1091 = vrot.lane.b32.xlu0 %v831, 48
    %v1092 = vpop.permute.xlu0 %1091
    %v1095 = vsel %vm310, %v1089, 0
    %1097 = vmatpush.msra.mxu0 0.0
    %1098 = vmatpush.msra.mxu0 0.0
    %1099 = vmatpush.msra.mxu0 0.0
    %1100 = vmatpush.msra.mxu0 0.0
    %1101 = vmatpush.msra.mxu0 0.0
    %1102 = vmatpush.msra.mxu0 0.0
    %1103 = vmatpush.msra.mxu0 0.0
    %1104 = vmatpush.msra.mxu0 0.0
    %1105 = vmatpush.msra.mxu0 0.0
    %1106 = vmatpush.msra.mxu0 0.0
    %1107 = vmatpush.msra.mxu0 0.0
    %1108 = vmatpush.msra.mxu0 0.0
    %1109 = vmatpush.msra.mxu0 0.0
    %1110 = vmatpush.msra.mxu0 0.0
    %1111 = vmatpush.msra.mxu0 0.0
    %1112 = vmatpush.msra.mxu0 %v1092
    %1113 = vmatmul.f32.gmra.mxu0 %v1095
    %v1114 = vpop.f32.mrf.mxu0
    %v1115 = vadd.f32 0.0, %v1114
    %1116 = vdwg.mxu0
    %1117 = vrot.lane.b32.xlu0 %v834, 48
    %v1118 = vpop.permute.xlu0 %1117
    %v1121 = vsel %vm310, %v1090, 0
    %1123 = vmatpush.msra.mxu0 0.0
    %1124 = vmatpush.msra.mxu0 0.0
    %1125 = vmatpush.msra.mxu0 0.0
    %1126 = vmatpush.msra.mxu0 0.0
    %1127 = vmatpush.msra.mxu0 0.0
    %1128 = vmatpush.msra.mxu0 0.0
    %1129 = vmatpush.msra.mxu0 0.0
    %1130 = vmatpush.msra.mxu0 0.0
    %1131 = vmatpush.msra.mxu0 0.0
    %1132 = vmatpush.msra.mxu0 0.0
    %1133 = vmatpush.msra.mxu0 0.0
    %1134 = vmatpush.msra.mxu0 0.0
    %1135 = vmatpush.msra.mxu0 0.0
    %1136 = vmatpush.msra.mxu0 0.0
    %1137 = vmatpush.msra.mxu0 0.0
    %1138 = vmatpush.msra.mxu0 %v1118
    %1139 = vmatmul.f32.gmra.mxu0 %v1121
    %v1140 = vpop.f32.mrf.mxu0
    %v1141 = vadd.f32 0.0, %v1140
    %1142 = vdwg.mxu0
    %v1144 = vsel %vm254, %v1115, 0
    %v1147 = vsel %vm254, %v1141, 0
    %1149 = vmatpush.msra.mxu0 0.0
    %1150 = vmatpush.msra.mxu0 0.0
    %1151 = vmatpush.msra.mxu0 0.0
    %1152 = vmatpush.msra.mxu0 0.0
    %1153 = vmatpush.msra.mxu0 0.0
    %1154 = vmatpush.msra.mxu0 0.0
    %1155 = vmatpush.msra.mxu0 0.0
    %1156 = vmatpush.msra.mxu0 0.0
    %1157 = vmatpush.msra.mxu0 0.0
    %1158 = vmatpush.msra.mxu0 0.0
    %1159 = vmatpush.msra.mxu0 0.0
    %1160 = vmatpush.msra.mxu0 0.0
    %1161 = vmatpush.msra.mxu0 0.0
    %1162 = vmatpush.msra.mxu0 0.0
    %1163 = vmatpush.msra.mxu0 %v840
    %1164 = vmatpush.msra.mxu0 %v839
    %1165 = vmatmul.f32.gmra.mxu0 %v1144
    %v1166 = vpop.f32.mrf.mxu0
    %v1167 = vadd.f32 0.0, %v1166
    %1168 = vmatmul.f32.gmra.mxu0 %v1147
    %v1169 = vpop.f32.mrf.mxu0
    %v1170 = vadd.f32 0.0, %v1169
    %1171 = vdwg.mxu0
    %v1172 = vadd.f32 %v1007, %v1167
    %v1173 = vadd.f32 %v1008, %v1170
    %v1174 = vadd.f32 %v795, %v1172
    %v1175 = vadd.f32 %v796, %v1173
    %s1176 = scalar_lea.vmem %s11, 1
    %v1177 = vld [vmem:[%s1176] sm:$0x1]
    %s1178 = scalar_lea.vmem %s12, 1
    %v1179 = vld [vmem:[%s1178] sm:$0x1]
    %v1180 = vsel %vm138, %v1174, 0.0
    %1181 = vadd.xlane.f32.xlu0 %v1180
    %v1182 = vpop.xlane.xlu0 %1181
    %v1183 = vsel %vm138, %v1175, 0.0
    %1184 = vadd.xlane.f32.xlu0 %v1183
    %v1185 = vpop.xlane.xlu0 %1184
    %v1186 = vmul.f32 %v1182, %v151
    %v1187 = vmul.f32 %v1185, %v151
    %v1188 = vsub.f32 %v1174, %v1186
    %v1189 = vsub.f32 %v1175, %v1187
    %v1190 = vmul.f32 %v1188, %v1188
    %v1191 = vmul.f32 %v1189, %v1189
    %v1192 = vsel %vm138, %v1190, 0.0
    %1193 = vadd.xlane.f32.xlu0 %v1192
    %v1194 = vpop.xlane.xlu0 %1193
    %v1195 = vsel %vm138, %v1191, 0.0
    %1196 = vadd.xlane.f32.xlu0 %v1195
    %v1197 = vpop.xlane.xlu0 %1196
    %v1198 = vmul.f32 %v1194, %v151
    %v1199 = vmul.f32 %v1197, %v151
    %v1200 = vadd.f32 %v1198, 1e-12
    %v1201 = vadd.f32 %v1199, 1e-12
    %v1202 = vrsqrt.pop %v1200
    %v1203 = vmul.f32 %v1202, %v1200
    %v1204 = vmul.f32 %v1203, %v1202
    %v1205 = vmul.f32 0.5, %v1204
    %v1206 = vsub.f32 1.5, %v1205
    %v1207 = vmul.f32 %v1202, %v1206
    %vm1208 = vweird.f32 %v1200
    %vm1209 = vweird.f32 %v1202
    %vm1210 = vmor %vm1208, %vm1209
    %v1211 = vsel %vm1210, %v1202, %v1207
    %v1212 = vrsqrt.pop %v1201
    %v1213 = vmul.f32 %v1212, %v1201
    %v1214 = vmul.f32 %v1213, %v1212
    %v1215 = vmul.f32 0.5, %v1214
    %v1216 = vsub.f32 1.5, %v1215
    %v1217 = vmul.f32 %v1212, %v1216
    %vm1218 = vweird.f32 %v1201
    %vm1219 = vweird.f32 %v1212
    %vm1220 = vmor %vm1218, %vm1219
    %v1221 = vsel %vm1220, %v1212, %v1217
    %v1222 = vmul.f32 %v1188, %v1211
    %v1223 = vmul.f32 %v1189, %v1221
    %v1225 = vperm.slane %v1177, 0
    %v1227 = vmul.f32 %v1222, %v1225
    %v1228 = vmul.f32 %v1223, %v1225
    %v1230 = vperm.slane %v1179, 0
    %v1232 = vadd.f32 %v1227, %v1230
    %v1233 = vadd.f32 %v1228, %v1230
    %s1234 = scalar_lea.vmem %s13, 32
    %v1235 = vld [vmem:[%s1234] sm:$0xff]
    %v1236 = vld [vmem:[%s1234 + $0x8] sm:$0xff]
    %v1237 = vld [vmem:[%s1234 + $0x10] sm:$0xff]
    %v1238 = vld [vmem:[%s1234 + $0x18] sm:$0xff]
    %s1239 = scalar_lea.vmem %s14, 1
    %v1240 = vld [vmem:[%s1239] sm:$0x1]
    %v1242 = vperm.slane %v1240, 0
    %v1245 = vsel %vm138, %v1232, 0
    %v1248 = vsel %vm138, %v1233, 0
    %1250 = vmatpush.msra.mxu0 0.0
    %1251 = vmatpush.msra.mxu0 0.0
    %1252 = vmatpush.msra.mxu0 0.0
    %1253 = vmatpush.msra.mxu0 0.0
    %1254 = vmatpush.msra.mxu0 0.0
    %1255 = vmatpush.msra.mxu0 0.0
    %1256 = vmatpush.msra.mxu0 0.0
    %1257 = vmatpush.msra.mxu0 0.0
    %1258 = vmatpush.msra.mxu0 0.0
    %1259 = vmatpush.msra.mxu0 0.0
    %1260 = vmatpush.msra.mxu0 0.0
    %1261 = vmatpush.msra.mxu0 0.0
    %1262 = vmatpush.msra.mxu0 %v1238
    %1263 = vmatpush.msra.mxu0 %v1237
    %1264 = vmatpush.msra.mxu0 %v1236
    %1265 = vmatpush.msra.mxu0 %v1235
    %1266 = vmatmul.f32.gmra.mxu0 %v1245
    %v1267 = vpop.f32.mrf.mxu0
    %v1268 = vadd.f32 %v1242, %v1267
    %1269 = vmatmul.f32.gmra.mxu0 %v1248
    %v1270 = vpop.f32.mrf.mxu0
    %v1271 = vadd.f32 %v1242, %v1270
    %1272 = vdwg.mxu0
    %v1273 = vmul.f32 %v1268, %v1268
    %v1274 = vmul.f32 %v1271, %v1271
    %v1275 = vmul.f32 %v1268, %v1273
    %v1276 = vmul.f32 %v1271, %v1274
    %v1277 = vmul.f32 %v1275, 0.044715
    %v1278 = vmul.f32 %v1276, 0.044715
    %v1279 = vadd.f32 %v1268, %v1277
    %v1280 = vadd.f32 %v1271, %v1278
    %v1281 = vmul.f32 %v1279, 0.7978846
    %v1282 = vmul.f32 %v1280, 0.7978846
    %v1283 = vtanh.pop %v1281
    %v1284 = vtanh.pop %v1282
    %v1285 = vadd.f32 %v1283, 1.0
    %v1286 = vadd.f32 %v1284, 1.0
    %v1287 = vmul.f32 %v1285, 0.5
    %v1288 = vmul.f32 %v1286, 0.5
    %v1289 = vmul.f32 %v1268, %v1287
    %v1290 = vmul.f32 %v1271, %v1288
    %s1291 = scalar_lea.vmem %s15, 64
    %v1292 = vld [vmem:[%s1291] sm:$0xff]
    %v1293 = vld [vmem:[%s1291 + $0x8] sm:$0xff]
    %v1294 = vld [vmem:[%s1291 + $0x10] sm:$0xff]
    %v1295 = vld [vmem:[%s1291 + $0x18] sm:$0xff]
    %v1296 = vld [vmem:[%s1291 + $0x20] sm:$0xff]
    %v1297 = vld [vmem:[%s1291 + $0x28] sm:$0xff]
    %v1298 = vld [vmem:[%s1291 + $0x30] sm:$0xff]
    %v1299 = vld [vmem:[%s1291 + $0x38] sm:$0xff]
    %s1300 = scalar_lea.vmem %s16, 1
    %v1301 = vld [vmem:[%s1300] sm:$0x1]
    %v1303 = vperm.slane %v1301, 0
    %v1306 = vsel %vm709, %v1289, 0
    %v1309 = vsel %vm709, %v1290, 0
    %1311 = vmatpush.msra.mxu0 0.0
    %1312 = vmatpush.msra.mxu0 0.0
    %1313 = vmatpush.msra.mxu0 0.0
    %1314 = vmatpush.msra.mxu0 0.0
    %1315 = vmatpush.msra.mxu0 0.0
    %1316 = vmatpush.msra.mxu0 0.0
    %1317 = vmatpush.msra.mxu0 0.0
    %1318 = vmatpush.msra.mxu0 0.0
    %1319 = vmatpush.msra.mxu0 %v1299
    %1320 = vmatpush.msra.mxu0 %v1298
    %1321 = vmatpush.msra.mxu0 %v1297
    %1322 = vmatpush.msra.mxu0 %v1296
    %1323 = vmatpush.msra.mxu0 %v1295
    %1324 = vmatpush.msra.mxu0 %v1294
    %1325 = vmatpush.msra.mxu0 %v1293
    %1326 = vmatpush.msra.mxu0 %v1292
    %1327 = vmatmul.f32.gmra.mxu0 %v1306
    %v1328 = vpop.f32.mrf.mxu0
    %v1329 = vadd.f32 %v1303, %v1328
    %1330 = vmatmul.f32.gmra.mxu0 %v1309
    %v1331 = vpop.f32.mrf.mxu0
    %v1332 = vadd.f32 %v1303, %v1331
    %1333 = vdwg.mxu0
    %v1334 = vadd.f32 %v1232, %v1329
    %v1335 = vadd.f32 %v1233, %v1332
    %s1336 = scalar_lea.vmem %s17, 1
    %v1337 = vld [vmem:[%s1336] sm:$0x1]
    %s1338 = scalar_lea.vmem %s18, 1
    %v1339 = vld [vmem:[%s1338] sm:$0x1]
    %v1340 = vsel %vm138, %v1334, 0.0
    %1341 = vadd.xlane.f32.xlu0 %v1340
    %v1342 = vpop.xlane.xlu0 %1341
    %v1343 = vsel %vm138, %v1335, 0.0
    %1344 = vadd.xlane.f32.xlu0 %v1343
    %v1345 = vpop.xlane.xlu0 %1344
    %v1346 = vmul.f32 %v1342, %v151
    %v1347 = vmul.f32 %v1345, %v151
    %v1348 = vsub.f32 %v1334, %v1346
    %v1349 = vsub.f32 %v1335, %v1347
    %v1350 = vmul.f32 %v1348, %v1348
    %v1351 = vmul.f32 %v1349, %v1349
    %v1352 = vsel %vm138, %v1350, 0.0
    %1353 = vadd.xlane.f32.xlu0 %v1352
    %v1354 = vpop.xlane.xlu0 %1353
    %v1355 = vsel %vm138, %v1351, 0.0
    %1356 = vadd.xlane.f32.xlu0 %v1355
    %v1357 = vpop.xlane.xlu0 %1356
    %v1358 = vmul.f32 %v1354, %v151
    %v1359 = vmul.f32 %v1357, %v151
    %v1360 = vadd.f32 %v1358, 1e-12
    %v1361 = vadd.f32 %v1359, 1e-12
    %v1362 = vrsqrt.pop %v1360
    %v1363 = vmul.f32 %v1362, %v1360
    %v1364 = vmul.f32 %v1363, %v1362
    %v1365 = vmul.f32 0.5, %v1364
    %v1366 = vsub.f32 1.5, %v1365
    %v1367 = vmul.f32 %v1362, %v1366
    %vm1368 = vweird.f32 %v1360
    %vm1369 = vweird.f32 %v1362
    %vm1370 = vmor %vm1368, %vm1369
    %v1371 = vsel %vm1370, %v1362, %v1367
    %v1372 = vrsqrt.pop %v1361
    %v1373 = vmul.f32 %v1372, %v1361
    %v1374 = vmul.f32 %v1373, %v1372
    %v1375 = vmul.f32 0.5, %v1374
    %v1376 = vsub.f32 1.5, %v1375
    %v1377 = vmul.f32 %v1372, %v1376
    %vm1378 = vweird.f32 %v1361
    %vm1379 = vweird.f32 %v1372
    %vm1380 = vmor %vm1378, %vm1379
    %v1381 = vsel %vm1380, %v1372, %v1377
    %v1382 = vmul.f32 %v1348, %v1371
    %v1383 = vmul.f32 %v1349, %v1381
    %v1385 = vperm.slane %v1337, 0
    %v1387 = vmul.f32 %v1382, %v1385
    %v1388 = vmul.f32 %v1383, %v1385
    %v1390 = vperm.slane %v1339, 0
    %v1392 = vadd.f32 %v1387, %v1390
    %v1393 = vadd.f32 %v1388, %v1390
    %v1394 = vld [vmem:[%s19] sm:$0xff]
    %v1395 = vld [vmem:[%s19 + $0x8] sm:$0xff]
    %v1396 = vld [vmem:[%s19 + $0x10] sm:$0xff]
    %v1397 = vld [vmem:[%s19 + $0x18] sm:$0xff]
    %v1398 = vld [vmem:[%s20] sm:$0x1]
    %v1400 = vperm.slane %v1398, 0
    %v1404 = vrot.slane %v1393, 7
    %vm1405 = vcmask 1041409
    %v1406 = vsel %vm1405, %v1404, %v1392
    %v1407 = vsel %vm138, %v1406, 0
    %1409 = vmatpush.msra.mxu0 0.0
    %1410 = vmatpush.msra.mxu0 0.0
    %1411 = vmatpush.msra.mxu0 0.0
    %1412 = vmatpush.msra.mxu0 0.0
    %1413 = vmatpush.msra.mxu0 0.0
    %1414 = vmatpush.msra.mxu0 0.0
    %1415 = vmatpush.msra.mxu0 0.0
    %1416 = vmatpush.msra.mxu0 0.0
    %1417 = vmatpush.msra.mxu0 0.0
    %1418 = vmatpush.msra.mxu0 0.0
    %1419 = vmatpush.msra.mxu0 0.0
    %1420 = vmatpush.msra.mxu0 0.0
    %1421 = vmatpush.msra.mxu0 %v1397
    %1422 = vmatpush.msra.mxu0 %v1396
    %1423 = vmatpush.msra.mxu0 %v1395
    %1424 = vmatpush.msra.mxu0 %v1394
    %1425 = vmatmul.f32.gmra.mxu0 %v1407
    %v1426 = vpop.f32.mrf.mxu0
    %v1427 = vadd.f32 %v1400, %v1426
    %1428 = vdwg.mxu0
    %v1429 = vtanh.pop %v1427
    %v1430 = vld [vmem:[%s21] sm:$0xff]
    %v1431 = vld [vmem:[%s21 + $0x8] sm:$0xff]
    %v1432 = vld [vmem:[%s21 + $0x10] sm:$0xff]
    %v1433 = vld [vmem:[%s21 + $0x18] sm:$0xff]
    %v1434 = vld [vmem:[%s22] sm:$0x1]
    %v1436 = vperm.slane %v1434, 0
    %v1439 = vsel %vm138, %v1429, 0
    %1441 = vmatpush.msra.mxu0 0.0
    %1442 = vmatpush.msra.mxu0 0.0
    %1443 = vmatpush.msra.mxu0 0.0
    %1444 = vmatpush.msra.mxu0 0.0
    %1445 = vmatpush.msra.mxu0 0.0
    %1446 = vmatpush.msra.mxu0 0.0
    %1447 = vmatpush.msra.mxu0 0.0
    %1448 = vmatpush.msra.mxu0 0.0
    %1449 = vmatpush.msra.mxu0 0.0
    %1450 = vmatpush.msra.mxu0 0.0
    %1451 = vmatpush.msra.mxu0 0.0
    %1452 = vmatpush.msra.mxu0 0.0
    %1453 = vmatpush.msra.mxu0 %v1433
    %1454 = vmatpush.msra.mxu0 %v1432
    %1455 = vmatpush.msra.mxu0 %v1431
    %1456 = vmatpush.msra.mxu0 %v1430
    %1457 = vmatmul.f32.gmra.mxu0 %v1439
    %v1458 = vpop.f32.mrf.mxu0
    %v1459 = vadd.f32 %v1436, %v1458
    %1460 = vdwg.mxu0
    %1461 = vst [vmem:[#allocation2] sm:$0x3] %v1459
    %v1462 = vld [vmem:[%s2] sm:$0x3]
    %1463 = vset.pattern.permute.xlu0 0
    %1464 = vperm.xlu0 %1463, %v1462
    %v1465 = vpop.permute.xlu0 %1464
    %vm1466 = vcmp.eq.s32.totalorder %v81, %v1465
    %v1467 = vsel %vm1466, 1, 0
    %v1468 = vcvt.s32.f32 %v1467
    %vm1469 = vcmask 1041408
    %v1470 = vsel %vm1469, %v1459, -inf
    %1471 = vmax.xlane.f32.xlu0 %v1470
    %v1472 = vpop.xlane.xlu0 %1471
    %v1473 = vsub.f32 %v1459, %v1472
    %v1474 = vmul.f32 %v1473, 1.442695
    %v1475 = vpow.pop %v1474
    %v1476 = vsel %vm1469, %v1475, 0.0
    %1477 = vadd.xlane.f32.xlu0 %v1476
    %v1478 = vpop.xlane.xlu0 %1477
    %v1479 = vlog2.pop %v1478
    %v1480 = vmul.f32 %v1479, 0.6931472
    %v1481 = vadd.f32 %v1472, %v1480
    %v1482 = vsub.f32 %v1481, %v1459
    %v1483 = vmul.f32 %v1468, %v1482
    %v1484 = vsel %vm1469, %v1483, 0.0
    %1485 = vadd.xlane.f32.xlu0 %v1484
    %v1486 = vpop.xlane.xlu0 %1485
    %vm1487 = vcmask 1024
    %v1488 = vsel %vm1487, %v1486, 0.0
    %1489 = vadd.xlane.f32.xlu0 %v1488
    %v1490 = vpop.xlane.xlu0 %1489
    %v1491 = vrot.slane %v1490, 4
    %v1492 = vadd.f32 %v1490, %v1491
    %v1493 = vrot.slane %v1492, 2
    %v1494 = vadd.f32 %v1492, %v1493
    %v1495 = vrot.slane %v1494, 1
    %v1496 = vadd.f32 %v1494, %v1495
    %s1497 = vtos %v1496
    %s1498 = smul.f32 %s1497, 0.5
    %s1499 = scalar_lea.smem [#allocation5], 0
    %1500 = sst [smem:[%s1499]] %s1498
    // Predicated region
    $region94: #{forward.1} parent=1 // pred_check
      _
    $region95: #{forward.1} parent=1 // pred_check_branch
      %1502 = sbr.rel (0) target = $region97
    $region96: #{forward.1} parent=1 // pred_region
      %1504 = vsyncadd [#allocation3], 0
      %s1506 = sshll.u32 [#allocation2], 4
      %s1507 = int_to_ptr.vmem [resolvable:$true] %s1506
      %s1508 = sshll.u32 %s23, 4
      %s1509 = int_to_ptr.hbm [resolvable:$true] %s1508
      %1511 = dma.vmem_to_hbm [thread:$0]  %s1507, 32, %s1509, [#allocation3]
    $region97: #{forward.1} parent=1 // pred_fallthru
      _
    // Predicated region
    $region98: #{forward.1} parent=1 // pred_check
      _
    $region99: #{forward.1} parent=1 // pred_check_branch
      %1513 = sbr.rel (0) target = $region101
    $region100: #{forward.1} parent=1 // pred_region
      %1515 = vsyncadd [#allocation4], 0
      %s1517 = sshll.u32 %s24, 4
      %s1518 = int_to_ptr.hbm [resolvable:$true] %s1517
      %1520 = dma.smem_to_hbm [#allocation5], 16, %s1518, [#allocation4]
    $region101: #{forward.1} parent=1 // pred_fallthru
      _
    // Predicated region
    $region102: #{forward.1} parent=1 // pred_check
      _
    $region103: #{forward.1} parent=1 // pred_check_branch
      %1522 = sbr.rel (0) target = $region105
    $region104: #{forward.1} parent=1 // pred_region
      %1524 = dma.done [#allocation3], 32
    $region105: #{forward.1} parent=1 // pred_fallthru
      _
    // Predicated region
    $region106: #{forward.1} parent=1 // pred_check
      _
    $region107: #{forward.1} parent=1 // pred_check_branch
      %1526 = sbr.rel (0) target = $region109
    $region108: #{forward.1} parent=1 // pred_region
      %1528 = dma.done [#allocation4], 16
    $region109: #{forward.1} parent=1 // pred_fallthru
      _
    %1529 = sfence
    %1530 = vsyncpa [#allocation3], 1
    %1531 = vsyncpa [#allocation4], 1

</llo_original>
